<compile_context>
chip_gen: v5e
topology: v5e:2x2
jax: 0.10.0
libtpu: 0.0.40
codegen_flags: <defaults>
</compile_context>

<pallas_src>
import functools

import jax
import jax.numpy as jnp
from jax.experimental import pallas as pl
from jax.experimental.pallas import tpu as pltpu


def _round_up(a, b):
    return (a + b - 1) // b * b


def _pad_to(a, shape):
    pads = [(0, t - s) for s, t in zip(a.shape, shape)]
    return jnp.pad(a, pads)


def mlp_kernel(n_h_layers, out_feats, normalize, *refs):
    """Full MLP forward for one row-tile of the input.

    encoder_in -> leaky_relu -> [hidden linear -> leaky_relu] * n_h_layers
    -> encoder_out -> (optional) LayerNorm(out_feats)

    Padded feature lanes of every activation are exactly zero because the
    padded weight rows/cols and biases are zero (done once in prepare_params).
    """
    refs = list(refs)
    x_ref = refs.pop(0)
    w_in_ref = refs.pop(0)
    b_in_ref = refs.pop(0)
    if n_h_layers > 0:
        w_h_ref = refs.pop(0)
        b_h_ref = refs.pop(0)
    w_out_ref = refs.pop(0)
    b_out_ref = refs.pop(0)
    if normalize:
        ln_w_ref = refs.pop(0)
        ln_b_ref = refs.pop(0)
    o_ref = refs.pop(0)

    compute = w_in_ref.dtype  # bf16 (default) or f32; MXU accumulates in f32.

    def leaky_relu(v):
        # F.leaky_relu (slope 0.01): max(v, 0.01*v) == where(v > 0, v, 0.01*v)
        return jnp.maximum(v, 0.01 * v)

    # encoder_in : x is unpadded feature width; w_in has matching row count.
    x = x_ref[...].astype(compute)
    h = jnp.dot(x, w_in_ref[...], preferred_element_type=jnp.float32)
    h = leaky_relu(h + b_in_ref[...]).astype(compute)

    # hidden layers
    if n_h_layers > 0:
        def layer(i, hc):
            z = jnp.dot(hc, w_h_ref[i], preferred_element_type=jnp.float32)
            return leaky_relu(z + b_h_ref[i]).astype(compute)

        if n_h_layers <= 2:
            for i in range(n_h_layers):      # small count: static unroll
                h = layer(i, h)
        else:
            # fori_loop bounds vreg live ranges (avoids spills from a giant
            # static unroll once tm / latent grow).
            h = jax.lax.fori_loop(0, n_h_layers, layer, h)

    # encoder_out
    y = jnp.dot(h, w_out_ref[...], preferred_element_type=jnp.float32)
    y = y + b_out_ref[...]

    if normalize:
        # LayerNorm over the real out_feats lanes.  Padded lanes of y are
        # exactly 0, so the mean sum is already correct; the variance uses the
        # centered two-pass form with a lane mask (no E[y^2]-mean^2
        # cancellation).
        out_pad = y.shape[-1]
        inv_n = 1.0 / out_feats
        mean = jnp.sum(y, axis=-1, keepdims=True) * inv_n
        d = y - mean
        if out_pad > out_feats:
            lane = jax.lax.broadcasted_iota(jnp.int32, (1, out_pad), 1)
            d2 = jnp.where(lane < out_feats, d * d, 0.0)
        else:
            d2 = d * d
        var = jnp.sum(d2, axis=-1, keepdims=True) * inv_n
        y = d * jax.lax.rsqrt(var + 1e-5)
        y = y * ln_w_ref[...] + ln_b_ref[...]   # padded ln_w/ln_b are 0

    o_ref[...] = y.astype(o_ref.dtype)


def prepare_params(params, n_h_layers, *, compute_dtype=jnp.bfloat16):
    """Pad feature dims to multiples of 128 and cast ONCE, ahead of time."""
    in_feats, latent = params["w_in"].shape
    out_feats = params["w_out"].shape[1]
    lat_pad = _round_up(latent, 128)
    out_pad = _round_up(out_feats, 128)

    prepared = {
        "n_h_layers": int(n_h_layers),
        "in_feats": int(in_feats),
        "out_feats": int(out_feats),
        "lat_pad": int(lat_pad),
        "out_pad": int(out_pad),
        "compute_dtype": compute_dtype,
        # contraction dim of w_in is the *unpadded* in_feats (x stays unpadded)
        "w_in": _pad_to(params["w_in"], (in_feats, lat_pad)).astype(compute_dtype),
        "b_in": _pad_to(params["b_in"], (1, lat_pad)).astype(jnp.float32),
        "w_out": _pad_to(params["w_out"], (lat_pad, out_pad)).astype(compute_dtype),
        "b_out": _pad_to(params["b_out"], (1, out_pad)).astype(jnp.float32),
    }
    if n_h_layers > 0:
        prepared["w_h"] = _pad_to(
            params["w_h"], (n_h_layers, lat_pad, lat_pad)).astype(compute_dtype)
        prepared["b_h"] = _pad_to(
            params["b_h"], (n_h_layers, 1, lat_pad)).astype(jnp.float32)
    if "ln_w" in params:
        prepared["ln_w"] = _pad_to(params["ln_w"], (1, out_pad)).astype(jnp.float32)
        prepared["ln_b"] = _pad_to(params["ln_b"], (1, out_pad)).astype(jnp.float32)
    return prepared


def _choose_row_tile(N, tm, row_align):
    """Big row tiles, but keep >= 2 grid steps so ("parallel",) shards the row
    axis across both TensorCores on v7x."""
    if N <= row_align or N % 8 != 0:
        # Single full-extent row block (block dim == array dim is always legal).
        return N
    half = _round_up(max(N // 2, row_align), row_align)
    return min(_round_up(tm, row_align), half)


def mlp_forward(x, prepared, *, normalize=True, tm=1024, out_dtype=jnp.bfloat16):
    """Pallas forward pass.  `prepared` comes from prepare_params()."""
    N, in_feats = x.shape
    assert in_feats == prepared["in_feats"]
    n_h = prepared["n_h_layers"]
    out_feats = prepared["out_feats"]
    lat_pad = prepared["lat_pad"]
    out_pad = prepared["out_pad"]
    compute_dtype = prepared["compute_dtype"]
    cdt_size = jnp.dtype(compute_dtype).itemsize
    if normalize:
        assert "ln_w" in prepared, "normalize=True needs ln_w/ln_b in params"

    row_align = 8 * max(1, 4 // cdt_size)        # 16 for bf16, 8 for f32
    tm_eff = _choose_row_tile(N, tm, row_align)
    grid = (pl.cdiv(N, tm_eff),)

    def const_spec(shape):
        # Constant-index block: fetched once, single-buffered.
        return pl.BlockSpec(shape, lambda i, _n=len(shape): (0,) * _n,
                            pipeline_mode=pl.Buffered(1))

    args = [x, prepared["w_in"], prepared["b_in"]]
    in_specs = [
        pl.BlockSpec((tm_eff, in_feats), lambda i: (i, 0)),   # x (unpadded f32)
        const_spec((in_feats, lat_pad)),                      # w_in
        const_spec((1, lat_pad)),                             # b_in
    ]
    if n_h > 0:
        args += [prepared["w_h"], prepared["b_h"]]
        in_specs += [const_spec((n_h, lat_pad, lat_pad)),     # w_h stack
                     const_spec((n_h, 1, lat_pad))]           # b_h stack
    args += [prepared["w_out"], prepared["b_out"]]
    in_specs += [const_spec((lat_pad, out_pad)),              # w_out
                 const_spec((1, out_pad))]                    # b_out
    if normalize:
        args += [prepared["ln_w"], prepared["ln_b"]]
        in_specs += [const_spec((1, out_pad)),                # ln weight
                     const_spec((1, out_pad))]                # ln bias

    # --- honest VMEM budget --------------------------------------------------
    # weights: single-buffered (Buffered(1)); x/out tiles: double-buffered.
    weight_bytes = (in_feats * lat_pad + n_h * lat_pad * lat_pad
                    + lat_pad * out_pad) * cdt_size \
                   + ((n_h + 1) * lat_pad + 3 * out_pad) * 4
    io_bytes = (2 * tm_eff * in_feats * x.dtype.itemsize
                + 2 * tm_eff * out_pad * jnp.dtype(out_dtype).itemsize)
    act_bytes = 4 * tm_eff * lat_pad * 4          # live f32/bf16 intermediates
    need = weight_bytes + io_bytes + act_bytes + (4 << 20)
    try:
        phys = int(pltpu.get_tpu_info().vmem_capacity_bytes)
    except Exception:
        phys = 64 << 20                            # conservative (v7x per-TC)
    cap = max(32 << 20, phys - (16 << 20))         # always leave headroom
    vmem_limit = int(min(max(need, 32 << 20), cap))

    flops = 2 * N * (in_feats * lat_pad + n_h * lat_pad * lat_pad
                     + lat_pad * out_pad)
    bytes_accessed = int(x.size * x.dtype.itemsize + weight_bytes
                         + N * out_pad * jnp.dtype(out_dtype).itemsize)
    cost = pl.CostEstimate(flops=flops,
                           transcendentals=N if normalize else 0,
                           bytes_accessed=bytes_accessed)

    kernel = functools.partial(mlp_kernel, n_h, out_feats, normalize)

    out_padded = pl.pallas_call(
        kernel,
        out_shape=jax.ShapeDtypeStruct((N, out_pad), out_dtype),
        grid_spec=pltpu.PrefetchScalarGridSpec(
            num_scalar_prefetch=0,
            grid=grid,
            in_specs=in_specs,
            out_specs=pl.BlockSpec((tm_eff, out_pad), lambda i: (i, 0)),
        ),
        compiler_params=pltpu.CompilerParams(
            dimension_semantics=("parallel",),
            vmem_limit_bytes=vmem_limit),
        cost_estimate=cost,
    )(*args)

    # Only the feature-lane slice remains (rows are exact); kernel stores stay
    # lane-dense (128-wide) and the slice is a tiny XLA op outside the kernel.
    return out_padded[:, :out_feats]


def init_params(key, in_feats, latent, out_feats, n_h_layers):
    """Deterministic init mimicking torch.nn.Linear default (uniform +-1/sqrt(fan_in))."""
    ks = jax.random.split(key, 6)

    def uni(k, shape, fan_in):
        bound = 1.0 / jnp.sqrt(fan_in)
        return jax.random.uniform(k, shape, jnp.float32, -bound, bound)

    return {
        "w_in": uni(ks[0], (in_feats, latent), in_feats),
        "b_in": uni(ks[1], (1, latent), in_feats),
        "w_h": uni(ks[2], (n_h_layers, latent, latent), latent),
        "b_h": uni(ks[3], (n_h_layers, 1, latent), latent),
        "w_out": uni(ks[4], (latent, out_feats), latent),
        "b_out": uni(ks[5], (1, out_feats), latent),
        "ln_w": jnp.ones((1, out_feats), jnp.float32),
        "ln_b": jnp.zeros((1, out_feats), jnp.float32),
    }


def mlp_reference(x, params, n_h_layers, normalize=True,
                  compute_dtype=jnp.float32):
    """Pure-JAX reference of the PyTorch forward (same matmul rounding points
    as the kernel when compute_dtype=bf16)."""
    def leaky(v):
        return jnp.where(v > 0, v, 0.01 * v)

    def dot(a, w):
        return jnp.dot(a.astype(compute_dtype), w.astype(compute_dtype),
                       preferred_element_type=jnp.float32)

    h = leaky(dot(x, params["w_in"]) + params["b_in"])
    for i in range(n_h_layers):
        h = leaky(dot(h, params["w_h"][i]) + params["b_h"][i])
    y = dot(h, params["w_out"]) + params["b_out"]
    if normalize:
        mean = jnp.mean(y, axis=-1, keepdims=True)
        var = jnp.mean((y - mean) ** 2, axis=-1, keepdims=True)
        y = (y - mean) * jax.lax.rsqrt(var + 1e-5)
        y = y * params["ln_w"] + params["ln_b"]
    return y


def _check(out, ref, atol=3e-2, rtol=3e-2):
    out32 = out.astype(jnp.float32)
    assert jnp.allclose(out32, ref, atol=atol, rtol=rtol), \
        float(jnp.max(jnp.abs(out32 - ref)))


if __name__ == "__main__":
    key = jax.random.PRNGKey(0)
    k_x, k_p = jax.random.split(key)

    # 1) Main run: N=512, 2 hidden layers (static unroll), LayerNorm on.
    N, in_feats, latent, out_feats, n_h = 512, 16, 32, 8, 2
    x = jax.random.normal(k_x, (N, in_feats), jnp.float32)
    params = init_params(k_p, in_feats, latent, out_feats, n_h)
    prepared = prepare_params(params, n_h)                 # pad/cast ONCE
    out = jax.block_until_ready(mlp_forward(x, prepared))  # grid=(2,), tm=256
    assert out.shape == (N, out_feats)
    _check(out, mlp_reference(x, params, n_h, compute_dtype=jnp.bfloat16))

    # 2) n_h_layers == 0 path (no hidden-weight blocks are DMA'd).
    N0 = 64
    x0 = jax.random.normal(k_x, (N0, in_feats), jnp.float32)
    params0 = init_params(k_p, in_feats, latent, out_feats, 0)
    prepared0 = prepare_params(params0, 0)
    out0 = jax.block_until_ready(mlp_forward(x0, prepared0))
    assert out0.shape == (N0, out_feats)
    _check(out0, mlp_reference(x0, params0, 0, compute_dtype=jnp.bfloat16))

    # 3) fori_loop hidden path (n_h > 2), normalize=False, ragged row boundary.
    N1, n_h1 = 200, 3
    x1 = jax.random.normal(k_x, (N1, in_feats), jnp.float32)
    params1 = init_params(k_p, in_feats, latent, out_feats, n_h1)
    prepared1 = prepare_params(params1, n_h1)
    out1 = jax.block_until_ready(mlp_forward(x1, prepared1, normalize=False))
    assert out1.shape == (N1, out_feats)
    _check(out1, mlp_reference(x1, params1, n_h1, normalize=False,
                               compute_dtype=jnp.bfloat16))

    print("KERNEL_OK")
</pallas_src>

<mosaic_0001>
module attributes {stable_mosaic.version = 11 : i64} {
  func.func @mlp_kernel(%arg0: i32, %arg1: memref<256x16xf32, #tpu.memory_space<vmem>>, %arg2: memref<16x128xbf16, #tpu.memory_space<vmem>>, %arg3: memref<1x128xf32, #tpu.memory_space<vmem>>, %arg4: memref<2x128x128xbf16, #tpu.memory_space<vmem>>, %arg5: memref<2x1x128xf32, #tpu.memory_space<vmem>>, %arg6: memref<128x128xbf16, #tpu.memory_space<vmem>>, %arg7: memref<1x128xf32, #tpu.memory_space<vmem>>, %arg8: memref<1x128xf32, #tpu.memory_space<vmem>>, %arg9: memref<1x128xf32, #tpu.memory_space<vmem>>, %arg10: memref<256x128xbf16, #tpu.memory_space<vmem>>) attributes {dimension_semantics = [#tpu.dimension_semantics<parallel>], iteration_bounds = array<i64: 2>, scalar_prefetch = 0 : i64, scratch_operands = 0 : i64, tpu.core_type = #tpu.core_type<tc>, window_params = [{transform_indices = @transform_0, window_bounds = array<i64: 256, 16>}, {pipeline_mode = #tpu.pipeline_mode<synchronous>, transform_indices = @transform_1, window_bounds = array<i64: 16, 128>}, {pipeline_mode = #tpu.pipeline_mode<synchronous>, transform_indices = @transform_2, window_bounds = array<i64: 1, 128>}, {pipeline_mode = #tpu.pipeline_mode<synchronous>, transform_indices = @transform_3, window_bounds = array<i64: 2, 128, 128>}, {pipeline_mode = #tpu.pipeline_mode<synchronous>, transform_indices = @transform_4, window_bounds = array<i64: 2, 1, 128>}, {pipeline_mode = #tpu.pipeline_mode<synchronous>, transform_indices = @transform_5, window_bounds = array<i64: 128, 128>}, {pipeline_mode = #tpu.pipeline_mode<synchronous>, transform_indices = @transform_6, window_bounds = array<i64: 1, 128>}, {pipeline_mode = #tpu.pipeline_mode<synchronous>, transform_indices = @transform_7, window_bounds = array<i64: 1, 128>}, {pipeline_mode = #tpu.pipeline_mode<synchronous>, transform_indices = @transform_8, window_bounds = array<i64: 1, 128>}, {transform_indices = @transform_9, window_bounds = array<i64: 256, 128>}]} {
    %c0 = arith.constant 0 : index
    %c0_0 = arith.constant 0 : index
    %0 = vector.load %arg1[%c0, %c0_0] : memref<256x16xf32, #tpu.memory_space<vmem>>, vector<256x16xf32>
    %1 = arith.truncf %0 : vector<256x16xf32> to vector<256x16xbf16>
    %c0_1 = arith.constant 0 : index
    %c0_2 = arith.constant 0 : index
    %2 = vector.load %arg2[%c0_1, %c0_2] : memref<16x128xbf16, #tpu.memory_space<vmem>>, vector<16x128xbf16>
    %cst = arith.constant dense<0.000000e+00> : vector<256x128xf32>
    %3 = tpu.matmul %1, %2, %cst {dimension_numbers = #tpu.dot_dimension_numbers<[1], [0], [0], [1], [0, 0, 1, 1], [], []>} : vector<256x16xbf16>, vector<16x128xbf16>, vector<256x128xf32> -> vector<256x128xf32>
    %c0_3 = arith.constant 0 : index
    %c0_4 = arith.constant 0 : index
    %4 = vector.load %arg3[%c0_3, %c0_4] : memref<1x128xf32, #tpu.memory_space<vmem>>, vector<1x128xf32>
    %5 = vector.broadcast %4 : vector<1x128xf32> to vector<256x128xf32>
    %6 = arith.addf %3, %5 : vector<256x128xf32>
    %cst_5 = arith.constant 0.00999999977 : f32
    %7 = vector.broadcast %cst_5 : f32 to vector<256x128xf32>
    %8 = arith.mulf %7, %6 : vector<256x128xf32>
    %9 = arith.maximumf %6, %8 : vector<256x128xf32>
    %10 = arith.truncf %9 : vector<256x128xf32> to vector<256x128xbf16>
    %c0_6 = arith.constant 0 : index
    %c0_7 = arith.constant 0 : index
    %c0_8 = arith.constant 0 : index
    %11 = vector.load %arg4[%c0_6, %c0_7, %c0_8] : memref<2x128x128xbf16, #tpu.memory_space<vmem>>, vector<1x128x128xbf16>
    %12 = vector.shape_cast %11 : vector<1x128x128xbf16> to vector<128x128xbf16>
    %cst_9 = arith.constant dense<0.000000e+00> : vector<256x128xf32>
    %13 = tpu.matmul %10, %12, %cst_9 {dimension_numbers = #tpu.dot_dimension_numbers<[1], [0], [0], [1], [0, 0, 1, 1], [], []>} : vector<256x128xbf16>, vector<128x128xbf16>, vector<256x128xf32> -> vector<256x128xf32>
    %c0_10 = arith.constant 0 : index
    %c0_11 = arith.constant 0 : index
    %c0_12 = arith.constant 0 : index
    %14 = vector.load %arg5[%c0_10, %c0_11, %c0_12] : memref<2x1x128xf32, #tpu.memory_space<vmem>>, vector<1x1x128xf32>
    %15 = vector.shape_cast %14 : vector<1x1x128xf32> to vector<1x128xf32>
    %16 = vector.broadcast %15 : vector<1x128xf32> to vector<256x128xf32>
    %17 = arith.addf %13, %16 : vector<256x128xf32>
    %cst_13 = arith.constant 0.00999999977 : f32
    %18 = vector.broadcast %cst_13 : f32 to vector<256x128xf32>
    %19 = arith.mulf %18, %17 : vector<256x128xf32>
    %20 = arith.maximumf %17, %19 : vector<256x128xf32>
    %21 = arith.truncf %20 : vector<256x128xf32> to vector<256x128xbf16>
    %c1 = arith.constant 1 : index
    %c0_14 = arith.constant 0 : index
    %c0_15 = arith.constant 0 : index
    %22 = vector.load %arg4[%c1, %c0_14, %c0_15] : memref<2x128x128xbf16, #tpu.memory_space<vmem>>, vector<1x128x128xbf16>
    %23 = vector.shape_cast %22 : vector<1x128x128xbf16> to vector<128x128xbf16>
    %cst_16 = arith.constant dense<0.000000e+00> : vector<256x128xf32>
    %24 = tpu.matmul %21, %23, %cst_16 {dimension_numbers = #tpu.dot_dimension_numbers<[1], [0], [0], [1], [0, 0, 1, 1], [], []>} : vector<256x128xbf16>, vector<128x128xbf16>, vector<256x128xf32> -> vector<256x128xf32>
    %c1_17 = arith.constant 1 : index
    %c0_18 = arith.constant 0 : index
    %c0_19 = arith.constant 0 : index
    %25 = vector.load %arg5[%c1_17, %c0_18, %c0_19] : memref<2x1x128xf32, #tpu.memory_space<vmem>>, vector<1x1x128xf32>
    %26 = vector.shape_cast %25 : vector<1x1x128xf32> to vector<1x128xf32>
    %27 = vector.broadcast %26 : vector<1x128xf32> to vector<256x128xf32>
    %28 = arith.addf %24, %27 : vector<256x128xf32>
    %cst_20 = arith.constant 0.00999999977 : f32
    %29 = vector.broadcast %cst_20 : f32 to vector<256x128xf32>
    %30 = arith.mulf %29, %28 : vector<256x128xf32>
    %31 = arith.maximumf %28, %30 : vector<256x128xf32>
    %32 = arith.truncf %31 : vector<256x128xf32> to vector<256x128xbf16>
    %c0_21 = arith.constant 0 : index
    %c0_22 = arith.constant 0 : index
    %33 = vector.load %arg6[%c0_21, %c0_22] : memref<128x128xbf16, #tpu.memory_space<vmem>>, vector<128x128xbf16>
    %cst_23 = arith.constant dense<0.000000e+00> : vector<256x128xf32>
    %34 = tpu.matmul %32, %33, %cst_23 {dimension_numbers = #tpu.dot_dimension_numbers<[1], [0], [0], [1], [0, 0, 1, 1], [], []>} : vector<256x128xbf16>, vector<128x128xbf16>, vector<256x128xf32> -> vector<256x128xf32>
    %c0_24 = arith.constant 0 : index
    %c0_25 = arith.constant 0 : index
    %35 = vector.load %arg7[%c0_24, %c0_25] : memref<1x128xf32, #tpu.memory_space<vmem>>, vector<1x128xf32>
    %36 = vector.broadcast %35 : vector<1x128xf32> to vector<256x128xf32>
    %37 = arith.addf %34, %36 : vector<256x128xf32>
    %cst_26 = arith.constant dense<0.000000e+00> : vector<256xf32>
    %38 = vector.multi_reduction <add>, %37, %cst_26 [1] : vector<256x128xf32> to vector<256xf32>
    %39 = vector.shape_cast %38 : vector<256xf32> to vector<256x1xf32>
    %cst_27 = arith.constant 1.250000e-01 : f32
    %40 = vector.broadcast %cst_27 : f32 to vector<256x1xf32>
    %41 = arith.mulf %39, %40 : vector<256x1xf32>
    %42 = vector.broadcast %41 : vector<256x1xf32> to vector<256x128xf32>
    %43 = arith.subf %37, %42 : vector<256x128xf32>
    %44 = tpu.iota {dimensions = array<i32: 1>} : vector<1x128xi32>
    %c8_i32 = arith.constant 8 : i32
    %45 = vector.broadcast %c8_i32 : i32 to vector<1x128xi32>
    %46 = arith.cmpi slt, %44, %45 : vector<1x128xi32>
    %47 = arith.mulf %43, %43 : vector<256x128xf32>
    %cst_28 = arith.constant 0.000000e+00 : f32
    %48 = vector.shape_cast %46 : vector<1x128xi1> to vector<1x128xi1>
    %49 = vector.broadcast %48 : vector<1x128xi1> to vector<256x128xi1>
    %50 = vector.broadcast %cst_28 : f32 to vector<256x128xf32>
    %51 = arith.select %49, %47, %50 : vector<256x128xi1>, vector<256x128xf32>
    %cst_29 = arith.constant dense<0.000000e+00> : vector<256xf32>
    %52 = vector.multi_reduction <add>, %51, %cst_29 [1] : vector<256x128xf32> to vector<256xf32>
    %53 = vector.shape_cast %52 : vector<256xf32> to vector<256x1xf32>
    %cst_30 = arith.constant 1.250000e-01 : f32
    %54 = vector.broadcast %cst_30 : f32 to vector<256x1xf32>
    %55 = arith.mulf %53, %54 : vector<256x1xf32>
    %cst_31 = arith.constant 9.99999974E-6 : f32
    %56 = vector.broadcast %cst_31 : f32 to vector<256x1xf32>
    %57 = arith.addf %55, %56 : vector<256x1xf32>
    %58 = math.rsqrt %57 : vector<256x1xf32>
    %59 = vector.broadcast %58 : vector<256x1xf32> to vector<256x128xf32>
    %60 = arith.mulf %43, %59 : vector<256x128xf32>
    %c0_32 = arith.constant 0 : index
    %c0_33 = arith.constant 0 : index
    %61 = vector.load %arg8[%c0_32, %c0_33] : memref<1x128xf32, #tpu.memory_space<vmem>>, vector<1x128xf32>
    %62 = vector.broadcast %61 : vector<1x128xf32> to vector<256x128xf32>
    %63 = arith.mulf %60, %62 : vector<256x128xf32>
    %c0_34 = arith.constant 0 : index
    %c0_35 = arith.constant 0 : index
    %64 = vector.load %arg9[%c0_34, %c0_35] : memref<1x128xf32, #tpu.memory_space<vmem>>, vector<1x128xf32>
    %65 = vector.broadcast %64 : vector<1x128xf32> to vector<256x128xf32>
    %66 = arith.addf %63, %65 : vector<256x128xf32>
    %67 = arith.truncf %66 : vector<256x128xf32> to vector<256x128xbf16>
    %c0_36 = arith.constant 0 : index
    %c0_37 = arith.constant 0 : index
    %68 = vector.load %arg10[%c0_36, %c0_37] : memref<256x128xbf16, #tpu.memory_space<vmem>>, vector<256x128xbf16>
    tpu.vector_store %arg10[%c0_36, %c0_37], %67 {strides = array<i32>} : memref<256x128xbf16, #tpu.memory_space<vmem>>, vector<256x128xbf16>,
    return
  }
  func.func @transform_0(%arg0: i32) -> (i32, i32) {
    %c0_i32 = arith.constant 0 : i32
    %c0_i32_0 = arith.constant 0 : i32
    return %arg0, %c0_i32 : i32, i32
  }
  func.func @transform_1(%arg0: i32) -> (i32, i32) {
    %c0_i32 = arith.constant 0 : i32
    %c0_i32_0 = arith.constant 0 : i32
    %c0_i32_1 = arith.constant 0 : i32
    return %c0_i32, %c0_i32_0 : i32, i32
  }
  func.func @transform_2(%arg0: i32) -> (i32, i32) {
    %c0_i32 = arith.constant 0 : i32
    %c0_i32_0 = arith.constant 0 : i32
    %c0_i32_1 = arith.constant 0 : i32
    return %c0_i32, %c0_i32_0 : i32, i32
  }
  func.func @transform_3(%arg0: i32) -> (i32, i32, i32) {
    %c0_i32 = arith.constant 0 : i32
    %c0_i32_0 = arith.constant 0 : i32
    %c0_i32_1 = arith.constant 0 : i32
    %c0_i32_2 = arith.constant 0 : i32
    return %c0_i32, %c0_i32_0, %c0_i32_1 : i32, i32, i32
  }
  func.func @transform_4(%arg0: i32) -> (i32, i32, i32) {
    %c0_i32 = arith.constant 0 : i32
    %c0_i32_0 = arith.constant 0 : i32
    %c0_i32_1 = arith.constant 0 : i32
    %c0_i32_2 = arith.constant 0 : i32
    return %c0_i32, %c0_i32_0, %c0_i32_1 : i32, i32, i32
  }
  func.func @transform_5(%arg0: i32) -> (i32, i32) {
    %c0_i32 = arith.constant 0 : i32
    %c0_i32_0 = arith.constant 0 : i32
    %c0_i32_1 = arith.constant 0 : i32
    return %c0_i32, %c0_i32_0 : i32, i32
  }
  func.func @transform_6(%arg0: i32) -> (i32, i32) {
    %c0_i32 = arith.constant 0 : i32
    %c0_i32_0 = arith.constant 0 : i32
    %c0_i32_1 = arith.constant 0 : i32
    return %c0_i32, %c0_i32_0 : i32, i32
  }
  func.func @transform_7(%arg0: i32) -> (i32, i32) {
    %c0_i32 = arith.constant 0 : i32
    %c0_i32_0 = arith.constant 0 : i32
    %c0_i32_1 = arith.constant 0 : i32
    return %c0_i32, %c0_i32_0 : i32, i32
  }
  func.func @transform_8(%arg0: i32) -> (i32, i32) {
    %c0_i32 = arith.constant 0 : i32
    %c0_i32_0 = arith.constant 0 : i32
    %c0_i32_1 = arith.constant 0 : i32
    return %c0_i32, %c0_i32_0 : i32, i32
  }
  func.func @transform_9(%arg0: i32) -> (i32, i32) {
    %c0_i32 = arith.constant 0 : i32
    %c0_i32_0 = arith.constant 0 : i32
    return %arg0, %c0_i32 : i32, i32
  }
}

</mosaic_0001>

<llo_original>
// kernel: tpu_custom_call.1
$region0: #{tpu_custom_call.1}
  #allocation0 [shape = 'u32[]', space=smem, size = 0x4, offset = 0x4, fixed_abs, tag = 'smem constant byte address 0x4 - core index']
  #allocation1 [shape = 'u32[72,128]{1,0:T(1,128)}', space=vmem, size = 0x9000, scoped, tag = 'internal scratch']
  %s0 = inlined_call_operand.vmem [shape: f32[512,16], index: 0, kind: input, shape index: {}]
  %s1 = inlined_call_operand.vmem [shape: bf16[16,128], index: 1, kind: input, shape index: {}]
  %s2 = inlined_call_operand.vmem [shape: f32[1,128], index: 2, kind: input, shape index: {}]
  %s3 = inlined_call_operand.vmem [shape: bf16[2,128,128], index: 3, kind: input, shape index: {}]
  %s4 = inlined_call_operand.vmem [shape: f32[2,1,128], index: 4, kind: input, shape index: {}]
  %s5 = inlined_call_operand.vmem [shape: bf16[128,128], index: 5, kind: input, shape index: {}]
  %s6 = inlined_call_operand.vmem [shape: f32[1,128], index: 6, kind: input, shape index: {}]
  %s7 = inlined_call_operand.vmem [shape: f32[1,128], index: 7, kind: input, shape index: {}]
  %s8 = inlined_call_operand.vmem [shape: f32[1,128], index: 8, kind: input, shape index: {}]
  %s9 = inlined_call_operand.hbm [shape: bf16[512,128], index: 9, kind: output, shape index: {}]
  %s10 = sld [smem:[#allocation0]]
  $region69: #{tpu_custom_call.1} parent=0
    _
  %s12 = ssub.s32 1, %s10
  %s13 = scalar_select 0, %s12, %s10
  $region1: #{tpu_custom_call.1} parent=0
    #allocation2 [shape = 'u8[131072]{0}', space=vmem, size = 0x20000, scoped, tag = 'output window, operand 0']
    #allocation3 [shape = 's32[2]{0}', space=sflag, size = 0x8, scoped, tag = 'scoped memory for tpu_custom_call.1']
    %14 = vsyncpa [#allocation3], 0
    %s15 = scalar_lea.sflag [#allocation3], 1
    %16 = vsyncpa %s15, 0
    loop: start=0, step=1, limit=4
    $region2: #{tpu_custom_call.1} parent=1 // loop_pre_header
      _
    $region3: #{tpu_custom_call.1} parent=1 // loop_header
      %s18 = sphi 0, %s22
      %p19 = scmp.ge.s32.totalorder %s18, 4
      %s28 = sphi 0, %s30
      %s31 = sphi 0, %s28
      %s32 = sphi 0, %s31
      %s48 = sphi 0, %s32
      %s52 = sphi 0, %s52
      %s54 = sphi 0, %s52
      %s55 = sphi 0, %s54
      %s69 = sphi 0, %s55
      %s73 = sphi 0, %s73
      %s75 = sphi 0, %s73
      %s76 = sphi 0, %s75
      %s90 = sphi 0, %s76
      %s94 = sphi 0, %s94
      %s96 = sphi 0, %s94
      %s97 = sphi 0, %s96
      %s111 = sphi 0, %s97
      %s115 = sphi 0, %s115
      %s117 = sphi 0, %s115
      %s118 = sphi 0, %s117
      %s132 = sphi 0, %s118
      %s136 = sphi 0, %s136
      %s138 = sphi 0, %s136
      %s139 = sphi 0, %s138
      %s153 = sphi 0, %s139
      %s157 = sphi 0, %s157
      %s159 = sphi 0, %s157
      %s160 = sphi 0, %s159
      %s174 = sphi 0, %s160
      %s178 = sphi 0, %s178
      %s180 = sphi 0, %s178
      %s181 = sphi 0, %s180
      %s195 = sphi 0, %s181
      %s199 = sphi 0, %s199
      %s201 = sphi 0, %s199
      %s202 = sphi 0, %s201
      %s216 = sphi 0, %s202
      %s222 = sphi 0, %s224
      %s225 = sphi 0, %s222
      %s226 = sphi 0, %s225
      %s242 = sphi 0, %s226
    $region4: #{tpu_custom_call.1} parent=1 // loop_header_branch
      %21 = sbr.rel (%p19) target = $region8
    $region5: #{tpu_custom_call.1} parent=1 // loop_body
      %s23 = ssub.s32 %s18, 1
      %s24 = ssub.s32 %s18, 2
      %s25 = sadd.s32 %s18, 1
      %s26 = ssub.s32 %s18, %s25
      %p27 = scmp.eq.s32.totalorder %s26, 0
      %s29 = sadd.s32 %s28, 1
      %s30 = scalar_select %p27, %s28, %s29
      %p33 = pneg %p27
      %p34 = scmp.eq.s32.totalorder %s18, 1
      %p35 = por %p33, %p34
      %p36 = scmp.ne.s32.totalorder %s28, %s31
      %p37 = scmp.eq.s32.totalorder %s18, 0
      %p38 = por %p36, %p37
      %p39 = scmp.ne.s32.totalorder %s28, %s31
      %p40 = scmp.eq.s32.totalorder %s23, 1
      %p41 = por %p39, %p40
      %p42 = scmp.ne.s32.totalorder %s31, %s32
      %p43 = scmp.eq.s32.totalorder %s23, 0
      %p44 = por %p42, %p43
      %p45 = scmp.ne.s32.totalorder %s31, %s32
      %p46 = scmp.eq.s32.totalorder %s24, 1
      %p47 = por %p45, %p46
      %p49 = scmp.ne.s32.totalorder %s32, %s48
      %p50 = scmp.eq.s32.totalorder %s24, 0
      %p51 = por %p49, %p50
      %s53 = sadd.s32 %s52, 1
      %p56 = scmp.eq.s32.totalorder %s18, 1
      %p57 = scmp.ne.s32.totalorder %s52, %s54
      %p58 = scmp.eq.s32.totalorder %s18, 0
      %p59 = por %p57, %p58
      %p60 = scmp.ne.s32.totalorder %s52, %s54
      %p61 = scmp.eq.s32.totalorder %s23, 1
      %p62 = por %p60, %p61
      %p63 = scmp.ne.s32.totalorder %s54, %s55
      %p64 = scmp.eq.s32.totalorder %s23, 0
      %p65 = por %p63, %p64
      %p66 = scmp.ne.s32.totalorder %s54, %s55
      %p67 = scmp.eq.s32.totalorder %s24, 1
      %p68 = por %p66, %p67
      %p70 = scmp.ne.s32.totalorder %s55, %s69
      %p71 = scmp.eq.s32.totalorder %s24, 0
      %p72 = por %p70, %p71
      %s74 = sadd.s32 %s73, 1
      %p77 = scmp.eq.s32.totalorder %s18, 1
      %p78 = scmp.ne.s32.totalorder %s73, %s75
      %p79 = scmp.eq.s32.totalorder %s18, 0
      %p80 = por %p78, %p79
      %p81 = scmp.ne.s32.totalorder %s73, %s75
      %p82 = scmp.eq.s32.totalorder %s23, 1
      %p83 = por %p81, %p82
      %p84 = scmp.ne.s32.totalorder %s75, %s76
      %p85 = scmp.eq.s32.totalorder %s23, 0
      %p86 = por %p84, %p85
      %p87 = scmp.ne.s32.totalorder %s75, %s76
      %p88 = scmp.eq.s32.totalorder %s24, 1
      %p89 = por %p87, %p88
      %p91 = scmp.ne.s32.totalorder %s76, %s90
      %p92 = scmp.eq.s32.totalorder %s24, 0
      %p93 = por %p91, %p92
      %s95 = sadd.s32 %s94, 1
      %p98 = scmp.eq.s32.totalorder %s18, 1
      %p99 = scmp.ne.s32.totalorder %s94, %s96
      %p100 = scmp.eq.s32.totalorder %s18, 0
      %p101 = por %p99, %p100
      %p102 = scmp.ne.s32.totalorder %s94, %s96
      %p103 = scmp.eq.s32.totalorder %s23, 1
      %p104 = por %p102, %p103
      %p105 = scmp.ne.s32.totalorder %s96, %s97
      %p106 = scmp.eq.s32.totalorder %s23, 0
      %p107 = por %p105, %p106
      %p108 = scmp.ne.s32.totalorder %s96, %s97
      %p109 = scmp.eq.s32.totalorder %s24, 1
      %p110 = por %p108, %p109
      %p112 = scmp.ne.s32.totalorder %s97, %s111
      %p113 = scmp.eq.s32.totalorder %s24, 0
      %p114 = por %p112, %p113
      %s116 = sadd.s32 %s115, 1
      %p119 = scmp.eq.s32.totalorder %s18, 1
      %p120 = scmp.ne.s32.totalorder %s115, %s117
      %p121 = scmp.eq.s32.totalorder %s18, 0
      %p122 = por %p120, %p121
      %p123 = scmp.ne.s32.totalorder %s115, %s117
      %p124 = scmp.eq.s32.totalorder %s23, 1
      %p125 = por %p123, %p124
      %p126 = scmp.ne.s32.totalorder %s117, %s118
      %p127 = scmp.eq.s32.totalorder %s23, 0
      %p128 = por %p126, %p127
      %p129 = scmp.ne.s32.totalorder %s117, %s118
      %p130 = scmp.eq.s32.totalorder %s24, 1
      %p131 = por %p129, %p130
      %p133 = scmp.ne.s32.totalorder %s118, %s132
      %p134 = scmp.eq.s32.totalorder %s24, 0
      %p135 = por %p133, %p134
      %s137 = sadd.s32 %s136, 1
      %p140 = scmp.eq.s32.totalorder %s18, 1
      %p141 = scmp.ne.s32.totalorder %s136, %s138
      %p142 = scmp.eq.s32.totalorder %s18, 0
      %p143 = por %p141, %p142
      %p144 = scmp.ne.s32.totalorder %s136, %s138
      %p145 = scmp.eq.s32.totalorder %s23, 1
      %p146 = por %p144, %p145
      %p147 = scmp.ne.s32.totalorder %s138, %s139
      %p148 = scmp.eq.s32.totalorder %s23, 0
      %p149 = por %p147, %p148
      %p150 = scmp.ne.s32.totalorder %s138, %s139
      %p151 = scmp.eq.s32.totalorder %s24, 1
      %p152 = por %p150, %p151
      %p154 = scmp.ne.s32.totalorder %s139, %s153
      %p155 = scmp.eq.s32.totalorder %s24, 0
      %p156 = por %p154, %p155
      %s158 = sadd.s32 %s157, 1
      %p161 = scmp.eq.s32.totalorder %s18, 1
      %p162 = scmp.ne.s32.totalorder %s157, %s159
      %p163 = scmp.eq.s32.totalorder %s18, 0
      %p164 = por %p162, %p163
      %p165 = scmp.ne.s32.totalorder %s157, %s159
      %p166 = scmp.eq.s32.totalorder %s23, 1
      %p167 = por %p165, %p166
      %p168 = scmp.ne.s32.totalorder %s159, %s160
      %p169 = scmp.eq.s32.totalorder %s23, 0
      %p170 = por %p168, %p169
      %p171 = scmp.ne.s32.totalorder %s159, %s160
      %p172 = scmp.eq.s32.totalorder %s24, 1
      %p173 = por %p171, %p172
      %p175 = scmp.ne.s32.totalorder %s160, %s174
      %p176 = scmp.eq.s32.totalorder %s24, 0
      %p177 = por %p175, %p176
      %s179 = sadd.s32 %s178, 1
      %p182 = scmp.eq.s32.totalorder %s18, 1
      %p183 = scmp.ne.s32.totalorder %s178, %s180
      %p184 = scmp.eq.s32.totalorder %s18, 0
      %p185 = por %p183, %p184
      %p186 = scmp.ne.s32.totalorder %s178, %s180
      %p187 = scmp.eq.s32.totalorder %s23, 1
      %p188 = por %p186, %p187
      %p189 = scmp.ne.s32.totalorder %s180, %s181
      %p190 = scmp.eq.s32.totalorder %s23, 0
      %p191 = por %p189, %p190
      %p192 = scmp.ne.s32.totalorder %s180, %s181
      %p193 = scmp.eq.s32.totalorder %s24, 1
      %p194 = por %p192, %p193
      %p196 = scmp.ne.s32.totalorder %s181, %s195
      %p197 = scmp.eq.s32.totalorder %s24, 0
      %p198 = por %p196, %p197
      %s200 = sadd.s32 %s199, 1
      %p203 = scmp.eq.s32.totalorder %s18, 1
      %p204 = scmp.ne.s32.totalorder %s199, %s201
      %p205 = scmp.eq.s32.totalorder %s18, 0
      %p206 = por %p204, %p205
      %p207 = scmp.ne.s32.totalorder %s199, %s201
      %p208 = scmp.eq.s32.totalorder %s23, 1
      %p209 = por %p207, %p208
      %p210 = scmp.ne.s32.totalorder %s201, %s202
      %p211 = scmp.eq.s32.totalorder %s23, 0
      %p212 = por %p210, %p211
      %p213 = scmp.ne.s32.totalorder %s201, %s202
      %p214 = scmp.eq.s32.totalorder %s24, 1
      %p215 = por %p213, %p214
      %p217 = scmp.ne.s32.totalorder %s202, %s216
      %p218 = scmp.eq.s32.totalorder %s24, 0
      %p219 = por %p217, %p218
      %s220 = ssub.s32 %s18, %s25
      %p221 = scmp.eq.s32.totalorder %s220, 0
      %s223 = sadd.s32 %s222, 1
      %s224 = scalar_select %p221, %s222, %s223
      %p227 = pneg %p221
      %p228 = scmp.eq.s32.totalorder %s18, 1
      %p229 = por %p227, %p228
      %p230 = scmp.ne.s32.totalorder %s222, %s225
      %p231 = scmp.eq.s32.totalorder %s18, 0
      %p232 = por %p230, %p231
      %p233 = scmp.ne.s32.totalorder %s222, %s225
      %p234 = scmp.eq.s32.totalorder %s23, 1
      %p235 = por %p233, %p234
      %p236 = scmp.ne.s32.totalorder %s225, %s226
      %p237 = scmp.eq.s32.totalorder %s23, 0
      %p238 = por %p236, %p237
      %p239 = scmp.ne.s32.totalorder %s225, %s226
      %p240 = scmp.eq.s32.totalorder %s24, 1
      %p241 = por %p239, %p240
      %p243 = scmp.ne.s32.totalorder %s226, %s242
      %p244 = scmp.eq.s32.totalorder %s24, 0
      %p245 = por %p243, %p244
      %p246 = scmp.le.s32.totalorder 1, %s18
      %p247 = scmp.lt.s32.totalorder %s18, 3
      %p248 = pnand %p246, %p247
      %p249 = pneg %p248
      // Predicated region
      $region9: #{tpu_custom_call.1} parent=5 // pred_check
        _
      $region10: #{tpu_custom_call.1} parent=5 // pred_check_branch
        %251 = sbr.rel (%p248) target = $region12
      $region11: #{tpu_custom_call.1} parent=5 // pred_region
        %s252 = ssub.s32 %s18, 1
        // Predicated region
        $region13: #{tpu_custom_call.1} parent=11 // pred_check
          %p253 = pneg %p65
        $region14: #{tpu_custom_call.1} parent=11 // pred_check_branch
          %255 = sbr.rel (%p253) target = $region16
        $region15: #{tpu_custom_call.1} parent=11 // pred_region
          _
        $region16: #{tpu_custom_call.1} parent=11 // pred_fallthru
          _
        // Predicated region
        $region17: #{tpu_custom_call.1} parent=11 // pred_check
          %p256 = pneg %p86
        $region18: #{tpu_custom_call.1} parent=11 // pred_check_branch
          %258 = sbr.rel (%p256) target = $region20
        $region19: #{tpu_custom_call.1} parent=11 // pred_region
          _
        $region20: #{tpu_custom_call.1} parent=11 // pred_fallthru
          _
        // Predicated region
        $region21: #{tpu_custom_call.1} parent=11 // pred_check
          %p259 = pneg %p107
        $region22: #{tpu_custom_call.1} parent=11 // pred_check_branch
          %261 = sbr.rel (%p259) target = $region24
        $region23: #{tpu_custom_call.1} parent=11 // pred_region
          _
        $region24: #{tpu_custom_call.1} parent=11 // pred_fallthru
          _
        // Predicated region
        $region25: #{tpu_custom_call.1} parent=11 // pred_check
          %p262 = pneg %p128
        $region26: #{tpu_custom_call.1} parent=11 // pred_check_branch
          %264 = sbr.rel (%p262) target = $region28
        $region27: #{tpu_custom_call.1} parent=11 // pred_region
          _
        $region28: #{tpu_custom_call.1} parent=11 // pred_fallthru
          _
        // Predicated region
        $region29: #{tpu_custom_call.1} parent=11 // pred_check
          %p265 = pneg %p149
        $region30: #{tpu_custom_call.1} parent=11 // pred_check_branch
          %267 = sbr.rel (%p265) target = $region32
        $region31: #{tpu_custom_call.1} parent=11 // pred_region
          _
        $region32: #{tpu_custom_call.1} parent=11 // pred_fallthru
          _
        // Predicated region
        $region33: #{tpu_custom_call.1} parent=11 // pred_check
          %p268 = pneg %p170
        $region34: #{tpu_custom_call.1} parent=11 // pred_check_branch
          %270 = sbr.rel (%p268) target = $region36
        $region35: #{tpu_custom_call.1} parent=11 // pred_region
          _
        $region36: #{tpu_custom_call.1} parent=11 // pred_fallthru
          _
        // Predicated region
        $region37: #{tpu_custom_call.1} parent=11 // pred_check
          %p271 = pneg %p191
        $region38: #{tpu_custom_call.1} parent=11 // pred_check_branch
          %273 = sbr.rel (%p271) target = $region40
        $region39: #{tpu_custom_call.1} parent=11 // pred_region
          _
        $region40: #{tpu_custom_call.1} parent=11 // pred_fallthru
          _
        // Predicated region
        $region41: #{tpu_custom_call.1} parent=11 // pred_check
          %p274 = pneg %p212
        $region42: #{tpu_custom_call.1} parent=11 // pred_check_branch
          %276 = sbr.rel (%p274) target = $region44
        $region43: #{tpu_custom_call.1} parent=11 // pred_region
          _
        $region44: #{tpu_custom_call.1} parent=11 // pred_fallthru
          _
      $region12: #{tpu_custom_call.1} parent=5 // pred_fallthru
        _
      %p277 = scmp.lt.s32.totalorder %s18, 2
      // Predicated region
      $region45: #{tpu_custom_call.1} parent=5 // pred_check
        %p278 = pneg %p277
      $region46: #{tpu_custom_call.1} parent=5 // pred_check_branch
        %280 = sbr.rel (%p278) target = $region48
      $region47: #{tpu_custom_call.1} parent=5 // pred_region
        // Predicated region
        $region49: #{tpu_custom_call.1} parent=47 // pred_check
          %p281 = pneg %p38
        $region50: #{tpu_custom_call.1} parent=47 // pred_check_branch
          %283 = sbr.rel (%p281) target = $region52
        $region51: #{tpu_custom_call.1} parent=47 // pred_region
          %s284 = smul.u32 32, %s18
          %p285 = scmp.lt.s32.totalorder %s284, 63
          %s286 = scalar_select %p285, %s284, 63
          %s287 = smul.addr %s286, 8
          %s288 = scalar_lea.vmem %s0, %s287
          %s289 = smul.u32 32, %s18
        $region52: #{tpu_custom_call.1} parent=47 // pred_fallthru
          _
      $region48: #{tpu_custom_call.1} parent=5 // pred_fallthru
        _
      %p290 = scmp.le.s32.totalorder 1, %s18
      %p291 = scmp.lt.s32.totalorder %s18, 3
      %p292 = pnand %p290, %p291
      %p293 = pneg %p292
      // Predicated region
      $region53: #{tpu_custom_call.1} parent=5 // pred_check
        _
      $region54: #{tpu_custom_call.1} parent=5 // pred_check_branch
        %295 = sbr.rel (%p292) target = $region56
      $region55: #{tpu_custom_call.1} parent=5 // pred_region
        %s296 = ssub.s32 %s18, 1
        %s297 = smul.u32 32, %s23
        %p298 = scmp.lt.s32.totalorder %s297, 63
        %s299 = scalar_select %p298, %s297, 63
        %s300 = smul.addr %s299, 8
        %s301 = scalar_lea.vmem %s0, %s300
        %p302 = pneg %p44
        %p303 = pneg %p41
        %p304 = pneg %p65
        %p305 = pneg %p62
        %p306 = pneg %p86
        %p307 = pneg %p83
        %p308 = pneg %p107
        %p309 = pneg %p104
        %p310 = pneg %p128
        %p311 = pneg %p125
        %p312 = pneg %p149
        %p313 = pneg %p146
        %p314 = pneg %p170
        %p315 = pneg %p167
        %p316 = pneg %p191
        %p317 = pneg %p188
        %p318 = pneg %p212
        %p319 = pneg %p209
        %p320 = pneg %p238
        %p321 = pneg %p235
        %s322 = sand.u32 %s225, 1
        %s323 = scalar_lea.sflag [#allocation3], %s322
        %s324 = sand.u32 %s225, 1
        %s325 = smul.addr %s324, 128
        %s326 = scalar_lea.vmem [#allocation2], %s325
        %s327 = smul.u32 32, %s23
        %p328 = scmp.lt.s32.totalorder %s327, 63
        %s329 = scalar_select %p328, %s327, 63
        %s330 = smul.addr %s329, 8
        %s331 = scalar_lea.vmem %s0, %s330
        %s332 = smul.u32 32, %s23
        %s333 = smul.u32 32, %s23
        %v335 = vld [vmem:[%s331] sm:$0xff]
        %v336 = vld [vmem:[%s331 + $0x8] sm:$0xff]
        %v337 = vld [vmem:[%s331 + $0x10] sm:$0xff]
        %v338 = vld [vmem:[%s331 + $0x18] sm:$0xff]
        %v339 = vld [vmem:[%s331 + $0x20] sm:$0xff]
        %v340 = vld [vmem:[%s331 + $0x28] sm:$0xff]
        %v341 = vld [vmem:[%s331 + $0x30] sm:$0xff]
        %v342 = vld [vmem:[%s331 + $0x38] sm:$0xff]
        %v343 = vld [vmem:[%s331 + $0x40] sm:$0xff]
        %v344 = vld [vmem:[%s331 + $0x48] sm:$0xff]
        %v345 = vld [vmem:[%s331 + $0x50] sm:$0xff]
        %v346 = vld [vmem:[%s331 + $0x58] sm:$0xff]
        %v347 = vld [vmem:[%s331 + $0x60] sm:$0xff]
        %v348 = vld [vmem:[%s331 + $0x68] sm:$0xff]
        %v349 = vld [vmem:[%s331 + $0x70] sm:$0xff]
        %v350 = vld [vmem:[%s331 + $0x78] sm:$0xff]
        %v351 = vld [vmem:[%s331 + $0x80] sm:$0xff]
        %v352 = vld [vmem:[%s331 + $0x88] sm:$0xff]
        %v353 = vld [vmem:[%s331 + $0x90] sm:$0xff]
        %v354 = vld [vmem:[%s331 + $0x98] sm:$0xff]
        %v355 = vld [vmem:[%s331 + $0xa0] sm:$0xff]
        %v356 = vld [vmem:[%s331 + $0xa8] sm:$0xff]
        %v357 = vld [vmem:[%s331 + $0xb0] sm:$0xff]
        %v358 = vld [vmem:[%s331 + $0xb8] sm:$0xff]
        %v359 = vld [vmem:[%s331 + $0xc0] sm:$0xff]
        %v360 = vld [vmem:[%s331 + $0xc8] sm:$0xff]
        %v361 = vld [vmem:[%s331 + $0xd0] sm:$0xff]
        %v362 = vld [vmem:[%s331 + $0xd8] sm:$0xff]
        %v363 = vld [vmem:[%s331 + $0xe0] sm:$0xff]
        %v364 = vld [vmem:[%s331 + $0xe8] sm:$0xff]
        %v365 = vld [vmem:[%s331 + $0xf0] sm:$0xff]
        %v366 = vld [vmem:[%s331 + $0xf8] sm:$0xff]
        %v367 = vpack.c.bf16 %v336, %v335
        %v368 = vpack.c.bf16 %v338, %v337
        %v369 = vpack.c.bf16 %v340, %v339
        %v370 = vpack.c.bf16 %v342, %v341
        %v371 = vpack.c.bf16 %v344, %v343
        %v372 = vpack.c.bf16 %v346, %v345
        %v373 = vpack.c.bf16 %v348, %v347
        %v374 = vpack.c.bf16 %v350, %v349
        %v375 = vpack.c.bf16 %v352, %v351
        %v376 = vpack.c.bf16 %v354, %v353
        %v377 = vpack.c.bf16 %v356, %v355
        %v378 = vpack.c.bf16 %v358, %v357
        %v379 = vpack.c.bf16 %v360, %v359
        %v380 = vpack.c.bf16 %v362, %v361
        %v381 = vpack.c.bf16 %v364, %v363
        %v382 = vpack.c.bf16 %v366, %v365
        %v383 = vld [vmem:[%s1] sm:$0xf]
        %v384 = vld [vmem:[%s1 + $0x4] sm:$0xf]
        %v385 = vld [vmem:[%s2] sm:$0x1]
        %v387 = vperm.slane %v385, 0
        %v391 = vunpack.c.l.b16 %v383
        %v392 = vunpack.c.l.b16 %v384
        %v393 = vpack.c.b16 %v392, %v391
        %vm395 = vcmask 130048
        %v397 = vsel %vm395, %v367, 0
        %v400 = vsel %vm395, %v368, 0
        %v403 = vsel %vm395, %v369, 0
        %v406 = vsel %vm395, %v370, 0
        %v409 = vsel %vm395, %v371, 0
        %v412 = vsel %vm395, %v372, 0
        %v415 = vsel %vm395, %v373, 0
        %v418 = vsel %vm395, %v374, 0
        %v421 = vsel %vm395, %v375, 0
        %v424 = vsel %vm395, %v376, 0
        %v427 = vsel %vm395, %v377, 0
        %v430 = vsel %vm395, %v378, 0
        %v433 = vsel %vm395, %v379, 0
        %v436 = vsel %vm395, %v380, 0
        %v439 = vsel %vm395, %v381, 0
        %v442 = vsel %vm395, %v382, 0
        %444 = vmatpush.bf16.msra.mxu0 0
        %445 = vmatpush.bf16.msra.mxu0 0
        %446 = vmatpush.bf16.msra.mxu0 0
        %447 = vmatpush.bf16.msra.mxu0 0
        %448 = vmatpush.bf16.msra.mxu0 0
        %449 = vmatpush.bf16.msra.mxu0 0
        %450 = vmatpush.bf16.msra.mxu0 0
        %451 = vmatpush.bf16.msra.mxu0 %v393
        %452 = vmatmul.bf16.gmra.mxu0 %v397
        %v453 = vpop.f32.mrf.mxu0
        %v454 = vadd.f32 %v387, %v453
        %v455 = vpop.f32.mrf.mxu0
        %v456 = vadd.f32 %v387, %v455
        %457 = vmatmul.bf16.gmra.mxu0 %v400
        %v458 = vpop.f32.mrf.mxu0
        %v459 = vadd.f32 %v387, %v458
        %v460 = vpop.f32.mrf.mxu0
        %v461 = vadd.f32 %v387, %v460
        %462 = vmatmul.bf16.gmra.mxu0 %v403
        %v463 = vpop.f32.mrf.mxu0
        %v464 = vadd.f32 %v387, %v463
        %v465 = vpop.f32.mrf.mxu0
        %v466 = vadd.f32 %v387, %v465
        %467 = vmatmul.bf16.gmra.mxu0 %v406
        %v468 = vpop.f32.mrf.mxu0
        %v469 = vadd.f32 %v387, %v468
        %v470 = vpop.f32.mrf.mxu0
        %v471 = vadd.f32 %v387, %v470
        %472 = vmatmul.bf16.gmra.mxu0 %v409
        %v473 = vpop.f32.mrf.mxu0
        %v474 = vadd.f32 %v387, %v473
        %v475 = vpop.f32.mrf.mxu0
        %v476 = vadd.f32 %v387, %v475
        %477 = vmatmul.bf16.gmra.mxu0 %v412
        %v478 = vpop.f32.mrf.mxu0
        %v479 = vadd.f32 %v387, %v478
        %v480 = vpop.f32.mrf.mxu0
        %v481 = vadd.f32 %v387, %v480
        %482 = vmatmul.bf16.gmra.mxu0 %v415
        %v483 = vpop.f32.mrf.mxu0
        %v484 = vadd.f32 %v387, %v483
        %v485 = vpop.f32.mrf.mxu0
        %v486 = vadd.f32 %v387, %v485
        %487 = vmatmul.bf16.gmra.mxu0 %v418
        %v488 = vpop.f32.mrf.mxu0
        %v489 = vadd.f32 %v387, %v488
        %v490 = vpop.f32.mrf.mxu0
        %v491 = vadd.f32 %v387, %v490
        %492 = vmatmul.bf16.gmra.mxu0 %v421
        %v493 = vpop.f32.mrf.mxu0
        %v494 = vadd.f32 %v387, %v493
        %v495 = vpop.f32.mrf.mxu0
        %v496 = vadd.f32 %v387, %v495
        %497 = vmatmul.bf16.gmra.mxu0 %v424
        %v498 = vpop.f32.mrf.mxu0
        %v499 = vadd.f32 %v387, %v498
        %v500 = vpop.f32.mrf.mxu0
        %v501 = vadd.f32 %v387, %v500
        %502 = vmatmul.bf16.gmra.mxu0 %v427
        %v503 = vpop.f32.mrf.mxu0
        %v504 = vadd.f32 %v387, %v503
        %v505 = vpop.f32.mrf.mxu0
        %v506 = vadd.f32 %v387, %v505
        %507 = vmatmul.bf16.gmra.mxu0 %v430
        %v508 = vpop.f32.mrf.mxu0
        %v509 = vadd.f32 %v387, %v508
        %v510 = vpop.f32.mrf.mxu0
        %v511 = vadd.f32 %v387, %v510
        %512 = vmatmul.bf16.gmra.mxu0 %v433
        %v513 = vpop.f32.mrf.mxu0
        %v514 = vadd.f32 %v387, %v513
        %v515 = vpop.f32.mrf.mxu0
        %v516 = vadd.f32 %v387, %v515
        %517 = vmatmul.bf16.gmra.mxu0 %v436
        %v518 = vpop.f32.mrf.mxu0
        %v519 = vadd.f32 %v387, %v518
        %v520 = vpop.f32.mrf.mxu0
        %v521 = vadd.f32 %v387, %v520
        %522 = vmatmul.bf16.gmra.mxu0 %v439
        %v523 = vpop.f32.mrf.mxu0
        %v524 = vadd.f32 %v387, %v523
        %v525 = vpop.f32.mrf.mxu0
        %v526 = vadd.f32 %v387, %v525
        %527 = vmatmul.bf16.gmra.mxu0 %v442
        %v528 = vpop.f32.mrf.mxu0
        %v529 = vadd.f32 %v387, %v528
        %v530 = vpop.f32.mrf.mxu0
        %v531 = vadd.f32 %v387, %v530
        %532 = vdwg.mxu0
        %v533 = vmul.f32 %v454, 0.01
        %v534 = vmul.f32 %v456, 0.01
        %v535 = vmul.f32 %v459, 0.01
        %v536 = vmul.f32 %v461, 0.01
        %v537 = vmul.f32 %v464, 0.01
        %v538 = vmul.f32 %v466, 0.01
        %v539 = vmul.f32 %v469, 0.01
        %v540 = vmul.f32 %v471, 0.01
        %v541 = vmul.f32 %v474, 0.01
        %v542 = vmul.f32 %v476, 0.01
        %v543 = vmul.f32 %v479, 0.01
        %v544 = vmul.f32 %v481, 0.01
        %v545 = vmul.f32 %v484, 0.01
        %v546 = vmul.f32 %v486, 0.01
        %v547 = vmul.f32 %v489, 0.01
        %v548 = vmul.f32 %v491, 0.01
        %v549 = vmul.f32 %v494, 0.01
        %v550 = vmul.f32 %v496, 0.01
        %v551 = vmul.f32 %v499, 0.01
        %v552 = vmul.f32 %v501, 0.01
        %v553 = vmul.f32 %v504, 0.01
        %v554 = vmul.f32 %v506, 0.01
        %v555 = vmul.f32 %v509, 0.01
        %v556 = vmul.f32 %v511, 0.01
        %v557 = vmul.f32 %v514, 0.01
        %v558 = vmul.f32 %v516, 0.01
        %v559 = vmul.f32 %v519, 0.01
        %v560 = vmul.f32 %v521, 0.01
        %v561 = vmul.f32 %v524, 0.01
        %v562 = vmul.f32 %v526, 0.01
        %v563 = vmul.f32 %v529, 0.01
        %v564 = vmul.f32 %v531, 0.01
        %v565 = vmax.f32 %v454, %v533
        %v566 = vmax.f32 %v456, %v534
        %v567 = vmax.f32 %v459, %v535
        %v568 = vmax.f32 %v461, %v536
        %v569 = vmax.f32 %v464, %v537
        %v570 = vmax.f32 %v466, %v538
        %v571 = vmax.f32 %v469, %v539
        %v572 = vmax.f32 %v471, %v540
        %v573 = vmax.f32 %v474, %v541
        %v574 = vmax.f32 %v476, %v542
        %v575 = vmax.f32 %v479, %v543
        %v576 = vmax.f32 %v481, %v544
        %v577 = vmax.f32 %v484, %v545
        %v578 = vmax.f32 %v486, %v546
        %v579 = vmax.f32 %v489, %v547
        %v580 = vmax.f32 %v491, %v548
        %v581 = vmax.f32 %v494, %v549
        %v582 = vmax.f32 %v496, %v550
        %v583 = vmax.f32 %v499, %v551
        %v584 = vmax.f32 %v501, %v552
        %v585 = vmax.f32 %v504, %v553
        %v586 = vmax.f32 %v506, %v554
        %v587 = vmax.f32 %v509, %v555
        %v588 = vmax.f32 %v511, %v556
        %v589 = vmax.f32 %v514, %v557
        %v590 = vmax.f32 %v516, %v558
        %v591 = vmax.f32 %v519, %v559
        %v592 = vmax.f32 %v521, %v560
        %v593 = vmax.f32 %v524, %v561
        %v594 = vmax.f32 %v526, %v562
        %v595 = vmax.f32 %v529, %v563
        %v596 = vmax.f32 %v531, %v564
        %v597 = vpack.c.bf16 %v566, %v565
        %v598 = vpack.c.bf16 %v568, %v567
        %v599 = vpack.c.bf16 %v570, %v569
        %v600 = vpack.c.bf16 %v572, %v571
        %v601 = vpack.c.bf16 %v574, %v573
        %v602 = vpack.c.bf16 %v576, %v575
        %v603 = vpack.c.bf16 %v578, %v577
        %v604 = vpack.c.bf16 %v580, %v579
        %v605 = vpack.c.bf16 %v582, %v581
        %v606 = vpack.c.bf16 %v584, %v583
        %v607 = vpack.c.bf16 %v586, %v585
        %v608 = vpack.c.bf16 %v588, %v587
        %v609 = vpack.c.bf16 %v590, %v589
        %v610 = vpack.c.bf16 %v592, %v591
        %v611 = vpack.c.bf16 %v594, %v593
        %v612 = vpack.c.bf16 %v596, %v595
        %v613 = vld [vmem:[%s3] sm:$0xf]
        %v614 = vld [vmem:[%s3 + $0x4] sm:$0xf]
        %v615 = vld [vmem:[%s3 + $0x8] sm:$0xf]
        %v616 = vld [vmem:[%s3 + $0xc] sm:$0xf]
        %v617 = vld [vmem:[%s3 + $0x10] sm:$0xf]
        %v618 = vld [vmem:[%s3 + $0x14] sm:$0xf]
        %v619 = vld [vmem:[%s3 + $0x18] sm:$0xf]
        %v620 = vld [vmem:[%s3 + $0x1c] sm:$0xf]
        %v621 = vld [vmem:[%s3 + $0x20] sm:$0xf]
        %v622 = vld [vmem:[%s3 + $0x24] sm:$0xf]
        %v623 = vld [vmem:[%s3 + $0x28] sm:$0xf]
        %v624 = vld [vmem:[%s3 + $0x2c] sm:$0xf]
        %v625 = vld [vmem:[%s3 + $0x30] sm:$0xf]
        %v626 = vld [vmem:[%s3 + $0x34] sm:$0xf]
        %v627 = vld [vmem:[%s3 + $0x38] sm:$0xf]
        %v628 = vld [vmem:[%s3 + $0x3c] sm:$0xf]
        %v629 = vld [vmem:[%s4] sm:$0x1]
        %v631 = vperm.slane %v629, 0
        %v649 = vunpack.c.l.b16 %v613
        %v650 = vunpack.c.l.b16 %v614
        %v651 = vunpack.c.l.b16 %v615
        %v652 = vunpack.c.l.b16 %v616
        %v653 = vunpack.c.l.b16 %v617
        %v654 = vunpack.c.l.b16 %v618
        %v655 = vunpack.c.l.b16 %v619
        %v656 = vunpack.c.l.b16 %v620
        %v657 = vunpack.c.l.b16 %v621
        %v658 = vunpack.c.l.b16 %v622
        %v659 = vunpack.c.l.b16 %v623
        %v660 = vunpack.c.l.b16 %v624
        %v661 = vunpack.c.l.b16 %v625
        %v662 = vunpack.c.l.b16 %v626
        %v663 = vunpack.c.l.b16 %v627
        %v664 = vunpack.c.l.b16 %v628
        %v665 = vpack.c.b16 %v650, %v649
        %v666 = vpack.c.b16 %v652, %v651
        %v667 = vpack.c.b16 %v654, %v653
        %v668 = vpack.c.b16 %v656, %v655
        %v669 = vpack.c.b16 %v658, %v657
        %v670 = vpack.c.b16 %v660, %v659
        %v671 = vpack.c.b16 %v662, %v661
        %v672 = vpack.c.b16 %v664, %v663
        %681 = vmatpush.bf16.msra.mxu0 %v672
        %682 = vmatpush.bf16.msra.mxu0 %v671
        %683 = vmatpush.bf16.msra.mxu0 %v670
        %684 = vmatpush.bf16.msra.mxu0 %v669
        %685 = vmatpush.bf16.msra.mxu0 %v668
        %686 = vmatpush.bf16.msra.mxu0 %v667
        %687 = vmatpush.bf16.msra.mxu0 %v666
        %688 = vmatpush.bf16.msra.mxu0 %v665
        %689 = vmatmul.bf16.gmra.mxu0 %v597
        %v690 = vpop.f32.mrf.mxu0
        %v691 = vadd.f32 %v631, %v690
        %v692 = vpop.f32.mrf.mxu0
        %v693 = vadd.f32 %v631, %v692
        %694 = vmatmul.bf16.gmra.mxu0 %v598
        %v695 = vpop.f32.mrf.mxu0
        %v696 = vadd.f32 %v631, %v695
        %v697 = vpop.f32.mrf.mxu0
        %v698 = vadd.f32 %v631, %v697
        %699 = vmatmul.bf16.gmra.mxu0 %v599
        %v700 = vpop.f32.mrf.mxu0
        %v701 = vadd.f32 %v631, %v700
        %v702 = vpop.f32.mrf.mxu0
        %v703 = vadd.f32 %v631, %v702
        %704 = vmatmul.bf16.gmra.mxu0 %v600
        %v705 = vpop.f32.mrf.mxu0
        %v706 = vadd.f32 %v631, %v705
        %v707 = vpop.f32.mrf.mxu0
        %v708 = vadd.f32 %v631, %v707
        %709 = vmatmul.bf16.gmra.mxu0 %v601
        %v710 = vpop.f32.mrf.mxu0
        %v711 = vadd.f32 %v631, %v710
        %v712 = vpop.f32.mrf.mxu0
        %v713 = vadd.f32 %v631, %v712
        %714 = vmatmul.bf16.gmra.mxu0 %v602
        %v715 = vpop.f32.mrf.mxu0
        %v716 = vadd.f32 %v631, %v715
        %v717 = vpop.f32.mrf.mxu0
        %v718 = vadd.f32 %v631, %v717
        %719 = vmatmul.bf16.gmra.mxu0 %v603
        %v720 = vpop.f32.mrf.mxu0
        %v721 = vadd.f32 %v631, %v720
        %v722 = vpop.f32.mrf.mxu0
        %v723 = vadd.f32 %v631, %v722
        %724 = vmatmul.bf16.gmra.mxu0 %v604
        %v725 = vpop.f32.mrf.mxu0
        %v726 = vadd.f32 %v631, %v725
        %v727 = vpop.f32.mrf.mxu0
        %v728 = vadd.f32 %v631, %v727
        %729 = vmatmul.bf16.gmra.mxu0 %v605
        %v730 = vpop.f32.mrf.mxu0
        %v731 = vadd.f32 %v631, %v730
        %v732 = vpop.f32.mrf.mxu0
        %v733 = vadd.f32 %v631, %v732
        %734 = vmatmul.bf16.gmra.mxu0 %v606
        %v735 = vpop.f32.mrf.mxu0
        %v736 = vadd.f32 %v631, %v735
        %v737 = vpop.f32.mrf.mxu0
        %v738 = vadd.f32 %v631, %v737
        %739 = vmatmul.bf16.gmra.mxu0 %v607
        %v740 = vpop.f32.mrf.mxu0
        %v741 = vadd.f32 %v631, %v740
        %v742 = vpop.f32.mrf.mxu0
        %v743 = vadd.f32 %v631, %v742
        %744 = vmatmul.bf16.gmra.mxu0 %v608
        %v745 = vpop.f32.mrf.mxu0
        %v746 = vadd.f32 %v631, %v745
        %v747 = vpop.f32.mrf.mxu0
        %v748 = vadd.f32 %v631, %v747
        %749 = vmatmul.bf16.gmra.mxu0 %v609
        %v750 = vpop.f32.mrf.mxu0
        %v751 = vadd.f32 %v631, %v750
        %v752 = vpop.f32.mrf.mxu0
        %v753 = vadd.f32 %v631, %v752
        %754 = vmatmul.bf16.gmra.mxu0 %v610
        %v755 = vpop.f32.mrf.mxu0
        %v756 = vadd.f32 %v631, %v755
        %v757 = vpop.f32.mrf.mxu0
        %v758 = vadd.f32 %v631, %v757
        %759 = vmatmul.bf16.gmra.mxu0 %v611
        %v760 = vpop.f32.mrf.mxu0
        %v761 = vadd.f32 %v631, %v760
        %v762 = vpop.f32.mrf.mxu0
        %v763 = vadd.f32 %v631, %v762
        %764 = vmatmul.bf16.gmra.mxu0 %v612
        %v765 = vpop.f32.mrf.mxu0
        %v766 = vadd.f32 %v631, %v765
        %v767 = vpop.f32.mrf.mxu0
        %v768 = vadd.f32 %v631, %v767
        %769 = vdwg.mxu0
        %v770 = vmul.f32 %v691, 0.01
        %v771 = vmul.f32 %v693, 0.01
        %v772 = vmul.f32 %v696, 0.01
        %v773 = vmul.f32 %v698, 0.01
        %v774 = vmul.f32 %v701, 0.01
        %v775 = vmul.f32 %v703, 0.01
        %v776 = vmul.f32 %v706, 0.01
        %v777 = vmul.f32 %v708, 0.01
        %v778 = vmul.f32 %v711, 0.01
        %v779 = vmul.f32 %v713, 0.01
        %v780 = vmul.f32 %v716, 0.01
        %v781 = vmul.f32 %v718, 0.01
        %v782 = vmul.f32 %v721, 0.01
        %v783 = vmul.f32 %v723, 0.01
        %v784 = vmul.f32 %v726, 0.01
        %v785 = vmul.f32 %v728, 0.01
        %v786 = vmul.f32 %v731, 0.01
        %v787 = vmul.f32 %v733, 0.01
        %v788 = vmul.f32 %v736, 0.01
        %v789 = vmul.f32 %v738, 0.01
        %v790 = vmul.f32 %v741, 0.01
        %v791 = vmul.f32 %v743, 0.01
        %v792 = vmul.f32 %v746, 0.01
        %v793 = vmul.f32 %v748, 0.01
        %v794 = vmul.f32 %v751, 0.01
        %v795 = vmul.f32 %v753, 0.01
        %v796 = vmul.f32 %v756, 0.01
        %v797 = vmul.f32 %v758, 0.01
        %v798 = vmul.f32 %v761, 0.01
        %v799 = vmul.f32 %v763, 0.01
        %v800 = vmul.f32 %v766, 0.01
        %v801 = vmul.f32 %v768, 0.01
        %v802 = vmax.f32 %v691, %v770
        %v803 = vmax.f32 %v693, %v771
        %v804 = vmax.f32 %v696, %v772
        %v805 = vmax.f32 %v698, %v773
        %v806 = vmax.f32 %v701, %v774
        %v807 = vmax.f32 %v703, %v775
        %v808 = vmax.f32 %v706, %v776
        %v809 = vmax.f32 %v708, %v777
        %v810 = vmax.f32 %v711, %v778
        %v811 = vmax.f32 %v713, %v779
        %v812 = vmax.f32 %v716, %v780
        %v813 = vmax.f32 %v718, %v781
        %v814 = vmax.f32 %v721, %v782
        %v815 = vmax.f32 %v723, %v783
        %v816 = vmax.f32 %v726, %v784
        %v817 = vmax.f32 %v728, %v785
        %v818 = vmax.f32 %v731, %v786
        %v819 = vmax.f32 %v733, %v787
        %v820 = vmax.f32 %v736, %v788
        %v821 = vmax.f32 %v738, %v789
        %v822 = vmax.f32 %v741, %v790
        %v823 = vmax.f32 %v743, %v791
        %v824 = vmax.f32 %v746, %v792
        %v825 = vmax.f32 %v748, %v793
        %v826 = vmax.f32 %v751, %v794
        %v827 = vmax.f32 %v753, %v795
        %v828 = vmax.f32 %v756, %v796
        %v829 = vmax.f32 %v758, %v797
        %v830 = vmax.f32 %v761, %v798
        %v831 = vmax.f32 %v763, %v799
        %v832 = vmax.f32 %v766, %v800
        %v833 = vmax.f32 %v768, %v801
        %v834 = vpack.c.bf16 %v803, %v802
        %v835 = vpack.c.bf16 %v805, %v804
        %v836 = vpack.c.bf16 %v807, %v806
        %v837 = vpack.c.bf16 %v809, %v808
        %v838 = vpack.c.bf16 %v811, %v810
        %v839 = vpack.c.bf16 %v813, %v812
        %v840 = vpack.c.bf16 %v815, %v814
        %v841 = vpack.c.bf16 %v817, %v816
        %v842 = vpack.c.bf16 %v819, %v818
        %v843 = vpack.c.bf16 %v821, %v820
        %v844 = vpack.c.bf16 %v823, %v822
        %v845 = vpack.c.bf16 %v825, %v824
        %v846 = vpack.c.bf16 %v827, %v826
        %v847 = vpack.c.bf16 %v829, %v828
        %v848 = vpack.c.bf16 %v831, %v830
        %v849 = vpack.c.bf16 %v833, %v832
        %s850 = scalar_lea.vmem %s3, 64
        %v851 = vld [vmem:[%s850] sm:$0xf]
        %v852 = vld [vmem:[%s850 + $0x4] sm:$0xf]
        %v853 = vld [vmem:[%s850 + $0x8] sm:$0xf]
        %v854 = vld [vmem:[%s850 + $0xc] sm:$0xf]
        %v855 = vld [vmem:[%s850 + $0x10] sm:$0xf]
        %v856 = vld [vmem:[%s850 + $0x14] sm:$0xf]
        %v857 = vld [vmem:[%s850 + $0x18] sm:$0xf]
        %v858 = vld [vmem:[%s850 + $0x1c] sm:$0xf]
        %v859 = vld [vmem:[%s850 + $0x20] sm:$0xf]
        %v860 = vld [vmem:[%s850 + $0x24] sm:$0xf]
        %v861 = vld [vmem:[%s850 + $0x28] sm:$0xf]
        %v862 = vld [vmem:[%s850 + $0x2c] sm:$0xf]
        %v863 = vld [vmem:[%s850 + $0x30] sm:$0xf]
        %v864 = vld [vmem:[%s850 + $0x34] sm:$0xf]
        %v865 = vld [vmem:[%s850 + $0x38] sm:$0xf]
        %v866 = vld [vmem:[%s850 + $0x3c] sm:$0xf]
        %s867 = scalar_lea.vmem %s4, 1
        %v868 = vld [vmem:[%s867] sm:$0x1]
        %v870 = vperm.slane %v868, 0
        %v888 = vunpack.c.l.b16 %v851
        %v889 = vunpack.c.l.b16 %v852
        %v890 = vunpack.c.l.b16 %v853
        %v891 = vunpack.c.l.b16 %v854
        %v892 = vunpack.c.l.b16 %v855
        %v893 = vunpack.c.l.b16 %v856
        %v894 = vunpack.c.l.b16 %v857
        %v895 = vunpack.c.l.b16 %v858
        %v896 = vunpack.c.l.b16 %v859
        %v897 = vunpack.c.l.b16 %v860
        %v898 = vunpack.c.l.b16 %v861
        %v899 = vunpack.c.l.b16 %v862
        %v900 = vunpack.c.l.b16 %v863
        %v901 = vunpack.c.l.b16 %v864
        %v902 = vunpack.c.l.b16 %v865
        %v903 = vunpack.c.l.b16 %v866
        %v904 = vpack.c.b16 %v889, %v888
        %v905 = vpack.c.b16 %v891, %v890
        %v906 = vpack.c.b16 %v893, %v892
        %v907 = vpack.c.b16 %v895, %v894
        %v908 = vpack.c.b16 %v897, %v896
        %v909 = vpack.c.b16 %v899, %v898
        %v910 = vpack.c.b16 %v901, %v900
        %v911 = vpack.c.b16 %v903, %v902
        %920 = vmatpush.bf16.msra.mxu0 %v911
        %921 = vmatpush.bf16.msra.mxu0 %v910
        %922 = vmatpush.bf16.msra.mxu0 %v909
        %923 = vmatpush.bf16.msra.mxu0 %v908
        %924 = vmatpush.bf16.msra.mxu0 %v907
        %925 = vmatpush.bf16.msra.mxu0 %v906
        %926 = vmatpush.bf16.msra.mxu0 %v905
        %927 = vmatpush.bf16.msra.mxu0 %v904
        %928 = vmatmul.bf16.gmra.mxu0 %v834
        %v929 = vpop.f32.mrf.mxu0
        %v930 = vadd.f32 %v870, %v929
        %v931 = vpop.f32.mrf.mxu0
        %v932 = vadd.f32 %v870, %v931
        %933 = vmatmul.bf16.gmra.mxu0 %v835
        %v934 = vpop.f32.mrf.mxu0
        %v935 = vadd.f32 %v870, %v934
        %v936 = vpop.f32.mrf.mxu0
        %v937 = vadd.f32 %v870, %v936
        %938 = vmatmul.bf16.gmra.mxu0 %v836
        %v939 = vpop.f32.mrf.mxu0
        %v940 = vadd.f32 %v870, %v939
        %v941 = vpop.f32.mrf.mxu0
        %v942 = vadd.f32 %v870, %v941
        %943 = vmatmul.bf16.gmra.mxu0 %v837
        %v944 = vpop.f32.mrf.mxu0
        %v945 = vadd.f32 %v870, %v944
        %v946 = vpop.f32.mrf.mxu0
        %v947 = vadd.f32 %v870, %v946
        %948 = vmatmul.bf16.gmra.mxu0 %v838
        %v949 = vpop.f32.mrf.mxu0
        %v950 = vadd.f32 %v870, %v949
        %v951 = vpop.f32.mrf.mxu0
        %v952 = vadd.f32 %v870, %v951
        %953 = vmatmul.bf16.gmra.mxu0 %v839
        %v954 = vpop.f32.mrf.mxu0
        %v955 = vadd.f32 %v870, %v954
        %v956 = vpop.f32.mrf.mxu0
        %v957 = vadd.f32 %v870, %v956
        %958 = vmatmul.bf16.gmra.mxu0 %v840
        %v959 = vpop.f32.mrf.mxu0
        %v960 = vadd.f32 %v870, %v959
        %v961 = vpop.f32.mrf.mxu0
        %v962 = vadd.f32 %v870, %v961
        %963 = vmatmul.bf16.gmra.mxu0 %v841
        %v964 = vpop.f32.mrf.mxu0
        %v965 = vadd.f32 %v870, %v964
        %v966 = vpop.f32.mrf.mxu0
        %v967 = vadd.f32 %v870, %v966
        %968 = vmatmul.bf16.gmra.mxu0 %v842
        %v969 = vpop.f32.mrf.mxu0
        %v970 = vadd.f32 %v870, %v969
        %v971 = vpop.f32.mrf.mxu0
        %v972 = vadd.f32 %v870, %v971
        %973 = vmatmul.bf16.gmra.mxu0 %v843
        %v974 = vpop.f32.mrf.mxu0
        %v975 = vadd.f32 %v870, %v974
        %v976 = vpop.f32.mrf.mxu0
        %v977 = vadd.f32 %v870, %v976
        %978 = vmatmul.bf16.gmra.mxu0 %v844
        %v979 = vpop.f32.mrf.mxu0
        %v980 = vadd.f32 %v870, %v979
        %v981 = vpop.f32.mrf.mxu0
        %v982 = vadd.f32 %v870, %v981
        %983 = vmatmul.bf16.gmra.mxu0 %v845
        %v984 = vpop.f32.mrf.mxu0
        %v985 = vadd.f32 %v870, %v984
        %v986 = vpop.f32.mrf.mxu0
        %v987 = vadd.f32 %v870, %v986
        %988 = vmatmul.bf16.gmra.mxu0 %v846
        %v989 = vpop.f32.mrf.mxu0
        %v990 = vadd.f32 %v870, %v989
        %v991 = vpop.f32.mrf.mxu0
        %v992 = vadd.f32 %v870, %v991
        %993 = vmatmul.bf16.gmra.mxu0 %v847
        %v994 = vpop.f32.mrf.mxu0
        %v995 = vadd.f32 %v870, %v994
        %v996 = vpop.f32.mrf.mxu0
        %v997 = vadd.f32 %v870, %v996
        %998 = vmatmul.bf16.gmra.mxu0 %v848
        %v999 = vpop.f32.mrf.mxu0
        %v1000 = vadd.f32 %v870, %v999
        %v1001 = vpop.f32.mrf.mxu0
        %v1002 = vadd.f32 %v870, %v1001
        %1003 = vmatmul.bf16.gmra.mxu0 %v849
        %v1004 = vpop.f32.mrf.mxu0
        %v1005 = vadd.f32 %v870, %v1004
        %v1006 = vpop.f32.mrf.mxu0
        %v1007 = vadd.f32 %v870, %v1006
        %1008 = vdwg.mxu0
        %v1009 = vmul.f32 %v930, 0.01
        %v1010 = vmul.f32 %v932, 0.01
        %v1011 = vmul.f32 %v935, 0.01
        %v1012 = vmul.f32 %v937, 0.01
        %v1013 = vmul.f32 %v940, 0.01
        %v1014 = vmul.f32 %v942, 0.01
        %v1015 = vmul.f32 %v945, 0.01
        %v1016 = vmul.f32 %v947, 0.01
        %v1017 = vmul.f32 %v950, 0.01
        %v1018 = vmul.f32 %v952, 0.01
        %v1019 = vmul.f32 %v955, 0.01
        %v1020 = vmul.f32 %v957, 0.01
        %v1021 = vmul.f32 %v960, 0.01
        %v1022 = vmul.f32 %v962, 0.01
        %v1023 = vmul.f32 %v965, 0.01
        %v1024 = vmul.f32 %v967, 0.01
        %v1025 = vmul.f32 %v970, 0.01
        %v1026 = vmul.f32 %v972, 0.01
        %v1027 = vmul.f32 %v975, 0.01
        %v1028 = vmul.f32 %v977, 0.01
        %v1029 = vmul.f32 %v980, 0.01
        %v1030 = vmul.f32 %v982, 0.01
        %v1031 = vmul.f32 %v985, 0.01
        %v1032 = vmul.f32 %v987, 0.01
        %v1033 = vmul.f32 %v990, 0.01
        %v1034 = vmul.f32 %v992, 0.01
        %v1035 = vmul.f32 %v995, 0.01
        %v1036 = vmul.f32 %v997, 0.01
        %v1037 = vmul.f32 %v1000, 0.01
        %v1038 = vmul.f32 %v1002, 0.01
        %v1039 = vmul.f32 %v1005, 0.01
        %v1040 = vmul.f32 %v1007, 0.01
        %v1041 = vmax.f32 %v930, %v1009
        %v1042 = vmax.f32 %v932, %v1010
        %v1043 = vmax.f32 %v935, %v1011
        %v1044 = vmax.f32 %v937, %v1012
        %v1045 = vmax.f32 %v940, %v1013
        %v1046 = vmax.f32 %v942, %v1014
        %v1047 = vmax.f32 %v945, %v1015
        %v1048 = vmax.f32 %v947, %v1016
        %v1049 = vmax.f32 %v950, %v1017
        %v1050 = vmax.f32 %v952, %v1018
        %v1051 = vmax.f32 %v955, %v1019
        %v1052 = vmax.f32 %v957, %v1020
        %v1053 = vmax.f32 %v960, %v1021
        %v1054 = vmax.f32 %v962, %v1022
        %v1055 = vmax.f32 %v965, %v1023
        %v1056 = vmax.f32 %v967, %v1024
        %v1057 = vmax.f32 %v970, %v1025
        %v1058 = vmax.f32 %v972, %v1026
        %v1059 = vmax.f32 %v975, %v1027
        %v1060 = vmax.f32 %v977, %v1028
        %v1061 = vmax.f32 %v980, %v1029
        %v1062 = vmax.f32 %v982, %v1030
        %v1063 = vmax.f32 %v985, %v1031
        %v1064 = vmax.f32 %v987, %v1032
        %v1065 = vmax.f32 %v990, %v1033
        %v1066 = vmax.f32 %v992, %v1034
        %v1067 = vmax.f32 %v995, %v1035
        %v1068 = vmax.f32 %v997, %v1036
        %v1069 = vmax.f32 %v1000, %v1037
        %v1070 = vmax.f32 %v1002, %v1038
        %v1071 = vmax.f32 %v1005, %v1039
        %v1072 = vmax.f32 %v1007, %v1040
        %v1073 = vpack.c.bf16 %v1042, %v1041
        %v1074 = vpack.c.bf16 %v1044, %v1043
        %v1075 = vpack.c.bf16 %v1046, %v1045
        %v1076 = vpack.c.bf16 %v1048, %v1047
        %v1077 = vpack.c.bf16 %v1050, %v1049
        %v1078 = vpack.c.bf16 %v1052, %v1051
        %v1079 = vpack.c.bf16 %v1054, %v1053
        %v1080 = vpack.c.bf16 %v1056, %v1055
        %v1081 = vpack.c.bf16 %v1058, %v1057
        %v1082 = vpack.c.bf16 %v1060, %v1059
        %v1083 = vpack.c.bf16 %v1062, %v1061
        %v1084 = vpack.c.bf16 %v1064, %v1063
        %v1085 = vpack.c.bf16 %v1066, %v1065
        %v1086 = vpack.c.bf16 %v1068, %v1067
        %v1087 = vpack.c.bf16 %v1070, %v1069
        %v1088 = vpack.c.bf16 %v1072, %v1071
        %v1089 = vld [vmem:[%s5] sm:$0xf]
        %v1090 = vld [vmem:[%s5 + $0x4] sm:$0xf]
        %v1091 = vld [vmem:[%s5 + $0x8] sm:$0xf]
        %v1092 = vld [vmem:[%s5 + $0xc] sm:$0xf]
        %v1093 = vld [vmem:[%s5 + $0x10] sm:$0xf]
        %v1094 = vld [vmem:[%s5 + $0x14] sm:$0xf]
        %v1095 = vld [vmem:[%s5 + $0x18] sm:$0xf]
        %v1096 = vld [vmem:[%s5 + $0x1c] sm:$0xf]
        %v1097 = vld [vmem:[%s5 + $0x20] sm:$0xf]
        %v1098 = vld [vmem:[%s5 + $0x24] sm:$0xf]
        %v1099 = vld [vmem:[%s5 + $0x28] sm:$0xf]
        %v1100 = vld [vmem:[%s5 + $0x2c] sm:$0xf]
        %v1101 = vld [vmem:[%s5 + $0x30] sm:$0xf]
        %v1102 = vld [vmem:[%s5 + $0x34] sm:$0xf]
        %v1103 = vld [vmem:[%s5 + $0x38] sm:$0xf]
        %v1104 = vld [vmem:[%s5 + $0x3c] sm:$0xf]
        %v1105 = vld [vmem:[%s6] sm:$0x1]
        %v1107 = vperm.slane %v1105, 0
        %v1125 = vunpack.c.l.b16 %v1089
        %v1126 = vunpack.c.l.b16 %v1090
        %v1127 = vunpack.c.l.b16 %v1091
        %v1128 = vunpack.c.l.b16 %v1092
        %v1129 = vunpack.c.l.b16 %v1093
        %v1130 = vunpack.c.l.b16 %v1094
        %v1131 = vunpack.c.l.b16 %v1095
        %v1132 = vunpack.c.l.b16 %v1096
        %v1133 = vunpack.c.l.b16 %v1097
        %v1134 = vunpack.c.l.b16 %v1098
        %v1135 = vunpack.c.l.b16 %v1099
        %v1136 = vunpack.c.l.b16 %v1100
        %v1137 = vunpack.c.l.b16 %v1101
        %v1138 = vunpack.c.l.b16 %v1102
        %v1139 = vunpack.c.l.b16 %v1103
        %v1140 = vunpack.c.l.b16 %v1104
        %v1141 = vpack.c.b16 %v1126, %v1125
        %v1142 = vpack.c.b16 %v1128, %v1127
        %v1143 = vpack.c.b16 %v1130, %v1129
        %v1144 = vpack.c.b16 %v1132, %v1131
        %v1145 = vpack.c.b16 %v1134, %v1133
        %v1146 = vpack.c.b16 %v1136, %v1135
        %v1147 = vpack.c.b16 %v1138, %v1137
        %v1148 = vpack.c.b16 %v1140, %v1139
        %1157 = vmatpush.bf16.msra.mxu0 %v1148
        %1158 = vmatpush.bf16.msra.mxu0 %v1147
        %1159 = vmatpush.bf16.msra.mxu0 %v1146
        %1160 = vmatpush.bf16.msra.mxu0 %v1145
        %1161 = vmatpush.bf16.msra.mxu0 %v1144
        %1162 = vmatpush.bf16.msra.mxu0 %v1143
        %1163 = vmatpush.bf16.msra.mxu0 %v1142
        %1164 = vmatpush.bf16.msra.mxu0 %v1141
        %1165 = vmatmul.bf16.gmra.mxu0 %v1073
        %v1166 = vpop.f32.mrf.mxu0
        %v1167 = vadd.f32 %v1107, %v1166
        %v1168 = vpop.f32.mrf.mxu0
        %v1169 = vadd.f32 %v1107, %v1168
        %1170 = vmatmul.bf16.gmra.mxu0 %v1074
        %v1171 = vpop.f32.mrf.mxu0
        %v1172 = vadd.f32 %v1107, %v1171
        %v1173 = vpop.f32.mrf.mxu0
        %v1174 = vadd.f32 %v1107, %v1173
        %1175 = vmatmul.bf16.gmra.mxu0 %v1075
        %v1176 = vpop.f32.mrf.mxu0
        %v1177 = vadd.f32 %v1107, %v1176
        %v1178 = vpop.f32.mrf.mxu0
        %v1179 = vadd.f32 %v1107, %v1178
        %1180 = vmatmul.bf16.gmra.mxu0 %v1076
        %v1181 = vpop.f32.mrf.mxu0
        %v1182 = vadd.f32 %v1107, %v1181
        %v1183 = vpop.f32.mrf.mxu0
        %v1184 = vadd.f32 %v1107, %v1183
        %1185 = vmatmul.bf16.gmra.mxu0 %v1077
        %v1186 = vpop.f32.mrf.mxu0
        %v1187 = vadd.f32 %v1107, %v1186
        %v1188 = vpop.f32.mrf.mxu0
        %v1189 = vadd.f32 %v1107, %v1188
        %1190 = vmatmul.bf16.gmra.mxu0 %v1078
        %v1191 = vpop.f32.mrf.mxu0
        %v1192 = vadd.f32 %v1107, %v1191
        %v1193 = vpop.f32.mrf.mxu0
        %v1194 = vadd.f32 %v1107, %v1193
        %1195 = vmatmul.bf16.gmra.mxu0 %v1079
        %v1196 = vpop.f32.mrf.mxu0
        %v1197 = vadd.f32 %v1107, %v1196
        %v1198 = vpop.f32.mrf.mxu0
        %v1199 = vadd.f32 %v1107, %v1198
        %1200 = vmatmul.bf16.gmra.mxu0 %v1080
        %v1201 = vpop.f32.mrf.mxu0
        %v1202 = vadd.f32 %v1107, %v1201
        %v1203 = vpop.f32.mrf.mxu0
        %v1204 = vadd.f32 %v1107, %v1203
        %1205 = vmatmul.bf16.gmra.mxu0 %v1081
        %v1206 = vpop.f32.mrf.mxu0
        %v1207 = vadd.f32 %v1107, %v1206
        %v1208 = vpop.f32.mrf.mxu0
        %v1209 = vadd.f32 %v1107, %v1208
        %1210 = vmatmul.bf16.gmra.mxu0 %v1082
        %v1211 = vpop.f32.mrf.mxu0
        %v1212 = vadd.f32 %v1107, %v1211
        %v1213 = vpop.f32.mrf.mxu0
        %v1214 = vadd.f32 %v1107, %v1213
        %1215 = vmatmul.bf16.gmra.mxu0 %v1083
        %v1216 = vpop.f32.mrf.mxu0
        %v1217 = vadd.f32 %v1107, %v1216
        %v1218 = vpop.f32.mrf.mxu0
        %v1219 = vadd.f32 %v1107, %v1218
        %1220 = vmatmul.bf16.gmra.mxu0 %v1084
        %v1221 = vpop.f32.mrf.mxu0
        %v1222 = vadd.f32 %v1107, %v1221
        %v1223 = vpop.f32.mrf.mxu0
        %v1224 = vadd.f32 %v1107, %v1223
        %1225 = vmatmul.bf16.gmra.mxu0 %v1085
        %v1226 = vpop.f32.mrf.mxu0
        %v1227 = vadd.f32 %v1107, %v1226
        %v1228 = vpop.f32.mrf.mxu0
        %v1229 = vadd.f32 %v1107, %v1228
        %1230 = vmatmul.bf16.gmra.mxu0 %v1086
        %v1231 = vpop.f32.mrf.mxu0
        %v1232 = vadd.f32 %v1107, %v1231
        %v1233 = vpop.f32.mrf.mxu0
        %v1234 = vadd.f32 %v1107, %v1233
        %1235 = vmatmul.bf16.gmra.mxu0 %v1087
        %v1236 = vpop.f32.mrf.mxu0
        %v1237 = vadd.f32 %v1107, %v1236
        %v1238 = vpop.f32.mrf.mxu0
        %v1239 = vadd.f32 %v1107, %v1238
        %1240 = vmatmul.bf16.gmra.mxu0 %v1088
        %v1241 = vpop.f32.mrf.mxu0
        %v1242 = vadd.f32 %v1107, %v1241
        %v1243 = vpop.f32.mrf.mxu0
        %v1244 = vadd.f32 %v1107, %v1243
        %1245 = vdwg.mxu0
        %1246 = vadd.xlane.f32.xlu0 %v1167
        %v1247 = vpop.xlane.xlu0 %1246
        %1248 = vadd.xlane.f32.xlu0 %v1169
        %v1249 = vpop.xlane.xlu0 %1248
        %1250 = vadd.xlane.f32.xlu0 %v1172
        %v1251 = vpop.xlane.xlu0 %1250
        %1252 = vadd.xlane.f32.xlu0 %v1174
        %v1253 = vpop.xlane.xlu0 %1252
        %1254 = vadd.xlane.f32.xlu0 %v1177
        %v1255 = vpop.xlane.xlu0 %1254
        %1256 = vadd.xlane.f32.xlu0 %v1179
        %v1257 = vpop.xlane.xlu0 %1256
        %1258 = vadd.xlane.f32.xlu0 %v1182
        %v1259 = vpop.xlane.xlu0 %1258
        %1260 = vadd.xlane.f32.xlu0 %v1184
        %v1261 = vpop.xlane.xlu0 %1260
        %1262 = vadd.xlane.f32.xlu0 %v1187
        %v1263 = vpop.xlane.xlu0 %1262
        %1264 = vadd.xlane.f32.xlu0 %v1189
        %v1265 = vpop.xlane.xlu0 %1264
        %1266 = vadd.xlane.f32.xlu0 %v1192
        %v1267 = vpop.xlane.xlu0 %1266
        %1268 = vadd.xlane.f32.xlu0 %v1194
        %v1269 = vpop.xlane.xlu0 %1268
        %1270 = vadd.xlane.f32.xlu0 %v1197
        %v1271 = vpop.xlane.xlu0 %1270
        %1272 = vadd.xlane.f32.xlu0 %v1199
        %v1273 = vpop.xlane.xlu0 %1272
        %1274 = vadd.xlane.f32.xlu0 %v1202
        %v1275 = vpop.xlane.xlu0 %1274
        %1276 = vadd.xlane.f32.xlu0 %v1204
        %v1277 = vpop.xlane.xlu0 %1276
        %1278 = vadd.xlane.f32.xlu0 %v1207
        %v1279 = vpop.xlane.xlu0 %1278
        %1280 = vadd.xlane.f32.xlu0 %v1209
        %v1281 = vpop.xlane.xlu0 %1280
        %1282 = vadd.xlane.f32.xlu0 %v1212
        %v1283 = vpop.xlane.xlu0 %1282
        %1284 = vadd.xlane.f32.xlu0 %v1214
        %v1285 = vpop.xlane.xlu0 %1284
        %1286 = vadd.xlane.f32.xlu0 %v1217
        %v1287 = vpop.xlane.xlu0 %1286
        %1288 = vadd.xlane.f32.xlu0 %v1219
        %v1289 = vpop.xlane.xlu0 %1288
        %1290 = vadd.xlane.f32.xlu0 %v1222
        %v1291 = vpop.xlane.xlu0 %1290
        %1292 = vadd.xlane.f32.xlu0 %v1224
        %v1293 = vpop.xlane.xlu0 %1292
        %1294 = vadd.xlane.f32.xlu0 %v1227
        %v1295 = vpop.xlane.xlu0 %1294
        %1296 = vadd.xlane.f32.xlu0 %v1229
        %v1297 = vpop.xlane.xlu0 %1296
        %1298 = vadd.xlane.f32.xlu0 %v1232
        %v1299 = vpop.xlane.xlu0 %1298
        %1300 = vadd.xlane.f32.xlu0 %v1234
        %v1301 = vpop.xlane.xlu0 %1300
        %1302 = vadd.xlane.f32.xlu0 %v1237
        %v1303 = vpop.xlane.xlu0 %1302
        %1304 = vadd.xlane.f32.xlu0 %v1239
        %v1305 = vpop.xlane.xlu0 %1304
        %1306 = vadd.xlane.f32.xlu0 %v1242
        %v1307 = vpop.xlane.xlu0 %1306
        %1308 = vadd.xlane.f32.xlu0 %v1244
        %v1309 = vpop.xlane.xlu0 %1308
        %v1310 = vmul.f32 %v1247, 0.125
        %v1311 = vmul.f32 %v1249, 0.125
        %v1312 = vmul.f32 %v1251, 0.125
        %v1313 = vmul.f32 %v1253, 0.125
        %v1314 = vmul.f32 %v1255, 0.125
        %v1315 = vmul.f32 %v1257, 0.125
        %v1316 = vmul.f32 %v1259, 0.125
        %v1317 = vmul.f32 %v1261, 0.125
        %v1318 = vmul.f32 %v1263, 0.125
        %v1319 = vmul.f32 %v1265, 0.125
        %v1320 = vmul.f32 %v1267, 0.125
        %v1321 = vmul.f32 %v1269, 0.125
        %v1322 = vmul.f32 %v1271, 0.125
        %v1323 = vmul.f32 %v1273, 0.125
        %v1324 = vmul.f32 %v1275, 0.125
        %v1325 = vmul.f32 %v1277, 0.125
        %v1326 = vmul.f32 %v1279, 0.125
        %v1327 = vmul.f32 %v1281, 0.125
        %v1328 = vmul.f32 %v1283, 0.125
        %v1329 = vmul.f32 %v1285, 0.125
        %v1330 = vmul.f32 %v1287, 0.125
        %v1331 = vmul.f32 %v1289, 0.125
        %v1332 = vmul.f32 %v1291, 0.125
        %v1333 = vmul.f32 %v1293, 0.125
        %v1334 = vmul.f32 %v1295, 0.125
        %v1335 = vmul.f32 %v1297, 0.125
        %v1336 = vmul.f32 %v1299, 0.125
        %v1337 = vmul.f32 %v1301, 0.125
        %v1338 = vmul.f32 %v1303, 0.125
        %v1339 = vmul.f32 %v1305, 0.125
        %v1340 = vmul.f32 %v1307, 0.125
        %v1341 = vmul.f32 %v1309, 0.125
        %v1342 = vsub.f32 %v1167, %v1310
        %v1343 = vsub.f32 %v1169, %v1311
        %v1344 = vsub.f32 %v1172, %v1312
        %v1345 = vsub.f32 %v1174, %v1313
        %v1346 = vsub.f32 %v1177, %v1314
        %v1347 = vsub.f32 %v1179, %v1315
        %v1348 = vsub.f32 %v1182, %v1316
        %v1349 = vsub.f32 %v1184, %v1317
        %v1350 = vsub.f32 %v1187, %v1318
        %v1351 = vsub.f32 %v1189, %v1319
        %v1352 = vsub.f32 %v1192, %v1320
        %v1353 = vsub.f32 %v1194, %v1321
        %v1354 = vsub.f32 %v1197, %v1322
        %v1355 = vsub.f32 %v1199, %v1323
        %v1356 = vsub.f32 %v1202, %v1324
        %v1357 = vsub.f32 %v1204, %v1325
        %v1358 = vsub.f32 %v1207, %v1326
        %v1359 = vsub.f32 %v1209, %v1327
        %v1360 = vsub.f32 %v1212, %v1328
        %v1361 = vsub.f32 %v1214, %v1329
        %v1362 = vsub.f32 %v1217, %v1330
        %v1363 = vsub.f32 %v1219, %v1331
        %v1364 = vsub.f32 %v1222, %v1332
        %v1365 = vsub.f32 %v1224, %v1333
        %v1366 = vsub.f32 %v1227, %v1334
        %v1367 = vsub.f32 %v1229, %v1335
        %v1368 = vsub.f32 %v1232, %v1336
        %v1369 = vsub.f32 %v1234, %v1337
        %v1370 = vsub.f32 %v1237, %v1338
        %v1371 = vsub.f32 %v1239, %v1339
        %v1372 = vsub.f32 %v1242, %v1340
        %v1373 = vsub.f32 %v1244, %v1341
        %v1374 = vlaneseq
        %v1375 = vand.u32 %v1374, 127
        %vm1376 = vcmp.lt.s32.totalorder %v1375, 8
        %v1377 = vmul.f32 %v1342, %v1342
        %v1378 = vmul.f32 %v1343, %v1343
        %v1379 = vmul.f32 %v1344, %v1344
        %v1380 = vmul.f32 %v1345, %v1345
        %v1381 = vmul.f32 %v1346, %v1346
        %v1382 = vmul.f32 %v1347, %v1347
        %v1383 = vmul.f32 %v1348, %v1348
        %v1384 = vmul.f32 %v1349, %v1349
        %v1385 = vmul.f32 %v1350, %v1350
        %v1386 = vmul.f32 %v1351, %v1351
        %v1387 = vmul.f32 %v1352, %v1352
        %v1388 = vmul.f32 %v1353, %v1353
        %v1389 = vmul.f32 %v1354, %v1354
        %v1390 = vmul.f32 %v1355, %v1355
        %v1391 = vmul.f32 %v1356, %v1356
        %v1392 = vmul.f32 %v1357, %v1357
        %v1393 = vmul.f32 %v1358, %v1358
        %v1394 = vmul.f32 %v1359, %v1359
        %v1395 = vmul.f32 %v1360, %v1360
        %v1396 = vmul.f32 %v1361, %v1361
        %v1397 = vmul.f32 %v1362, %v1362
        %v1398 = vmul.f32 %v1363, %v1363
        %v1399 = vmul.f32 %v1364, %v1364
        %v1400 = vmul.f32 %v1365, %v1365
        %v1401 = vmul.f32 %v1366, %v1366
        %v1402 = vmul.f32 %v1367, %v1367
        %v1403 = vmul.f32 %v1368, %v1368
        %v1404 = vmul.f32 %v1369, %v1369
        %v1405 = vmul.f32 %v1370, %v1370
        %v1406 = vmul.f32 %v1371, %v1371
        %v1407 = vmul.f32 %v1372, %v1372
        %v1408 = vmul.f32 %v1373, %v1373
        %v1409 = vsel %vm1376, 1, 0
        %vm1410 = vcmp.eq.s32.totalorder %v1409, 1
        %v1411 = vsel %vm1410, %v1377, 0.0
        %v1412 = vsel %vm1410, %v1378, 0.0
        %v1413 = vsel %vm1410, %v1379, 0.0
        %v1414 = vsel %vm1410, %v1380, 0.0
        %v1415 = vsel %vm1410, %v1381, 0.0
        %v1416 = vsel %vm1410, %v1382, 0.0
        %v1417 = vsel %vm1410, %v1383, 0.0
        %v1418 = vsel %vm1410, %v1384, 0.0
        %v1419 = vsel %vm1410, %v1385, 0.0
        %v1420 = vsel %vm1410, %v1386, 0.0
        %v1421 = vsel %vm1410, %v1387, 0.0
        %v1422 = vsel %vm1410, %v1388, 0.0
        %v1423 = vsel %vm1410, %v1389, 0.0
        %v1424 = vsel %vm1410, %v1390, 0.0
        %v1425 = vsel %vm1410, %v1391, 0.0
        %v1426 = vsel %vm1410, %v1392, 0.0
        %v1427 = vsel %vm1410, %v1393, 0.0
        %v1428 = vsel %vm1410, %v1394, 0.0
        %v1429 = vsel %vm1410, %v1395, 0.0
        %v1430 = vsel %vm1410, %v1396, 0.0
        %v1431 = vsel %vm1410, %v1397, 0.0
        %v1432 = vsel %vm1410, %v1398, 0.0
        %v1433 = vsel %vm1410, %v1399, 0.0
        %v1434 = vsel %vm1410, %v1400, 0.0
        %v1435 = vsel %vm1410, %v1401, 0.0
        %v1436 = vsel %vm1410, %v1402, 0.0
        %v1437 = vsel %vm1410, %v1403, 0.0
        %v1438 = vsel %vm1410, %v1404, 0.0
        %v1439 = vsel %vm1410, %v1405, 0.0
        %v1440 = vsel %vm1410, %v1406, 0.0
        %v1441 = vsel %vm1410, %v1407, 0.0
        %v1442 = vsel %vm1410, %v1408, 0.0
        %1443 = vadd.xlane.f32.xlu0 %v1411
        %v1444 = vpop.xlane.xlu0 %1443
        %1445 = vadd.xlane.f32.xlu0 %v1412
        %v1446 = vpop.xlane.xlu0 %1445
        %1447 = vadd.xlane.f32.xlu0 %v1413
        %v1448 = vpop.xlane.xlu0 %1447
        %1449 = vadd.xlane.f32.xlu0 %v1414
        %v1450 = vpop.xlane.xlu0 %1449
        %1451 = vadd.xlane.f32.xlu0 %v1415
        %v1452 = vpop.xlane.xlu0 %1451
        %1453 = vadd.xlane.f32.xlu0 %v1416
        %v1454 = vpop.xlane.xlu0 %1453
        %1455 = vadd.xlane.f32.xlu0 %v1417
        %v1456 = vpop.xlane.xlu0 %1455
        %1457 = vadd.xlane.f32.xlu0 %v1418
        %v1458 = vpop.xlane.xlu0 %1457
        %1459 = vadd.xlane.f32.xlu0 %v1419
        %v1460 = vpop.xlane.xlu0 %1459
        %1461 = vadd.xlane.f32.xlu0 %v1420
        %v1462 = vpop.xlane.xlu0 %1461
        %1463 = vadd.xlane.f32.xlu0 %v1421
        %v1464 = vpop.xlane.xlu0 %1463
        %1465 = vadd.xlane.f32.xlu0 %v1422
        %v1466 = vpop.xlane.xlu0 %1465
        %1467 = vadd.xlane.f32.xlu0 %v1423
        %v1468 = vpop.xlane.xlu0 %1467
        %1469 = vadd.xlane.f32.xlu0 %v1424
        %v1470 = vpop.xlane.xlu0 %1469
        %1471 = vadd.xlane.f32.xlu0 %v1425
        %v1472 = vpop.xlane.xlu0 %1471
        %1473 = vadd.xlane.f32.xlu0 %v1426
        %v1474 = vpop.xlane.xlu0 %1473
        %1475 = vadd.xlane.f32.xlu0 %v1427
        %v1476 = vpop.xlane.xlu0 %1475
        %1477 = vadd.xlane.f32.xlu0 %v1428
        %v1478 = vpop.xlane.xlu0 %1477
        %1479 = vadd.xlane.f32.xlu0 %v1429
        %v1480 = vpop.xlane.xlu0 %1479
        %1481 = vadd.xlane.f32.xlu0 %v1430
        %v1482 = vpop.xlane.xlu0 %1481
        %1483 = vadd.xlane.f32.xlu0 %v1431
        %v1484 = vpop.xlane.xlu0 %1483
        %1485 = vadd.xlane.f32.xlu0 %v1432
        %v1486 = vpop.xlane.xlu0 %1485
        %1487 = vadd.xlane.f32.xlu0 %v1433
        %v1488 = vpop.xlane.xlu0 %1487
        %1489 = vadd.xlane.f32.xlu0 %v1434
        %v1490 = vpop.xlane.xlu0 %1489
        %1491 = vadd.xlane.f32.xlu0 %v1435
        %v1492 = vpop.xlane.xlu0 %1491
        %1493 = vadd.xlane.f32.xlu0 %v1436
        %v1494 = vpop.xlane.xlu0 %1493
        %1495 = vadd.xlane.f32.xlu0 %v1437
        %v1496 = vpop.xlane.xlu0 %1495
        %1497 = vadd.xlane.f32.xlu0 %v1438
        %v1498 = vpop.xlane.xlu0 %1497
        %1499 = vadd.xlane.f32.xlu0 %v1439
        %v1500 = vpop.xlane.xlu0 %1499
        %1501 = vadd.xlane.f32.xlu0 %v1440
        %v1502 = vpop.xlane.xlu0 %1501
        %1503 = vadd.xlane.f32.xlu0 %v1441
        %v1504 = vpop.xlane.xlu0 %1503
        %1505 = vadd.xlane.f32.xlu0 %v1442
        %v1506 = vpop.xlane.xlu0 %1505
        %v1507 = vmul.f32 %v1444, 0.125
        %v1508 = vmul.f32 %v1446, 0.125
        %v1509 = vmul.f32 %v1448, 0.125
        %v1510 = vmul.f32 %v1450, 0.125
        %v1511 = vmul.f32 %v1452, 0.125
        %v1512 = vmul.f32 %v1454, 0.125
        %v1513 = vmul.f32 %v1456, 0.125
        %v1514 = vmul.f32 %v1458, 0.125
        %v1515 = vmul.f32 %v1460, 0.125
        %v1516 = vmul.f32 %v1462, 0.125
        %v1517 = vmul.f32 %v1464, 0.125
        %v1518 = vmul.f32 %v1466, 0.125
        %v1519 = vmul.f32 %v1468, 0.125
        %v1520 = vmul.f32 %v1470, 0.125
        %v1521 = vmul.f32 %v1472, 0.125
        %v1522 = vmul.f32 %v1474, 0.125
        %v1523 = vmul.f32 %v1476, 0.125
        %v1524 = vmul.f32 %v1478, 0.125
        %v1525 = vmul.f32 %v1480, 0.125
        %v1526 = vmul.f32 %v1482, 0.125
        %v1527 = vmul.f32 %v1484, 0.125
        %v1528 = vmul.f32 %v1486, 0.125
        %v1529 = vmul.f32 %v1488, 0.125
        %v1530 = vmul.f32 %v1490, 0.125
        %v1531 = vmul.f32 %v1492, 0.125
        %v1532 = vmul.f32 %v1494, 0.125
        %v1533 = vmul.f32 %v1496, 0.125
        %v1534 = vmul.f32 %v1498, 0.125
        %v1535 = vmul.f32 %v1500, 0.125
        %v1536 = vmul.f32 %v1502, 0.125
        %v1537 = vmul.f32 %v1504, 0.125
        %v1538 = vmul.f32 %v1506, 0.125
        %v1539 = vadd.f32 %v1507, 1e-05
        %v1540 = vadd.f32 %v1508, 1e-05
        %v1541 = vadd.f32 %v1509, 1e-05
        %v1542 = vadd.f32 %v1510, 1e-05
        %v1543 = vadd.f32 %v1511, 1e-05
        %v1544 = vadd.f32 %v1512, 1e-05
        %v1545 = vadd.f32 %v1513, 1e-05
        %v1546 = vadd.f32 %v1514, 1e-05
        %v1547 = vadd.f32 %v1515, 1e-05
        %v1548 = vadd.f32 %v1516, 1e-05
        %v1549 = vadd.f32 %v1517, 1e-05
        %v1550 = vadd.f32 %v1518, 1e-05
        %v1551 = vadd.f32 %v1519, 1e-05
        %v1552 = vadd.f32 %v1520, 1e-05
        %v1553 = vadd.f32 %v1521, 1e-05
        %v1554 = vadd.f32 %v1522, 1e-05
        %v1555 = vadd.f32 %v1523, 1e-05
        %v1556 = vadd.f32 %v1524, 1e-05
        %v1557 = vadd.f32 %v1525, 1e-05
        %v1558 = vadd.f32 %v1526, 1e-05
        %v1559 = vadd.f32 %v1527, 1e-05
        %v1560 = vadd.f32 %v1528, 1e-05
        %v1561 = vadd.f32 %v1529, 1e-05
        %v1562 = vadd.f32 %v1530, 1e-05
        %v1563 = vadd.f32 %v1531, 1e-05
        %v1564 = vadd.f32 %v1532, 1e-05
        %v1565 = vadd.f32 %v1533, 1e-05
        %v1566 = vadd.f32 %v1534, 1e-05
        %v1567 = vadd.f32 %v1535, 1e-05
        %v1568 = vadd.f32 %v1536, 1e-05
        %v1569 = vadd.f32 %v1537, 1e-05
        %v1570 = vadd.f32 %v1538, 1e-05
        %v1571 = vrsqrt.pop %v1539
        %v1572 = vmul.f32 %v1571, %v1539
        %v1573 = vmul.f32 %v1572, %v1571
        %v1574 = vmul.f32 0.5, %v1573
        %v1575 = vsub.f32 1.5, %v1574
        %v1576 = vmul.f32 %v1571, %v1575
        %vm1577 = vweird.f32 %v1539
        %vm1578 = vweird.f32 %v1571
        %vm1579 = vmor %vm1577, %vm1578
        %v1580 = vsel %vm1579, %v1571, %v1576
        %v1581 = vrsqrt.pop %v1540
        %v1582 = vmul.f32 %v1581, %v1540
        %v1583 = vmul.f32 %v1582, %v1581
        %v1584 = vmul.f32 0.5, %v1583
        %v1585 = vsub.f32 1.5, %v1584
        %v1586 = vmul.f32 %v1581, %v1585
        %vm1587 = vweird.f32 %v1540
        %vm1588 = vweird.f32 %v1581
        %vm1589 = vmor %vm1587, %vm1588
        %v1590 = vsel %vm1589, %v1581, %v1586
        %v1591 = vrsqrt.pop %v1541
        %v1592 = vmul.f32 %v1591, %v1541
        %v1593 = vmul.f32 %v1592, %v1591
        %v1594 = vmul.f32 0.5, %v1593
        %v1595 = vsub.f32 1.5, %v1594
        %v1596 = vmul.f32 %v1591, %v1595
        %vm1597 = vweird.f32 %v1541
        %vm1598 = vweird.f32 %v1591
        %vm1599 = vmor %vm1597, %vm1598
        %v1600 = vsel %vm1599, %v1591, %v1596
        %v1601 = vrsqrt.pop %v1542
        %v1602 = vmul.f32 %v1601, %v1542
        %v1603 = vmul.f32 %v1602, %v1601
        %v1604 = vmul.f32 0.5, %v1603
        %v1605 = vsub.f32 1.5, %v1604
        %v1606 = vmul.f32 %v1601, %v1605
        %vm1607 = vweird.f32 %v1542
        %vm1608 = vweird.f32 %v1601
        %vm1609 = vmor %vm1607, %vm1608
        %v1610 = vsel %vm1609, %v1601, %v1606
        %v1611 = vrsqrt.pop %v1543
        %v1612 = vmul.f32 %v1611, %v1543
        %v1613 = vmul.f32 %v1612, %v1611
        %v1614 = vmul.f32 0.5, %v1613
        %v1615 = vsub.f32 1.5, %v1614
        %v1616 = vmul.f32 %v1611, %v1615
        %vm1617 = vweird.f32 %v1543
        %vm1618 = vweird.f32 %v1611
        %vm1619 = vmor %vm1617, %vm1618
        %v1620 = vsel %vm1619, %v1611, %v1616
        %v1621 = vrsqrt.pop %v1544
        %v1622 = vmul.f32 %v1621, %v1544
        %v1623 = vmul.f32 %v1622, %v1621
        %v1624 = vmul.f32 0.5, %v1623
        %v1625 = vsub.f32 1.5, %v1624
        %v1626 = vmul.f32 %v1621, %v1625
        %vm1627 = vweird.f32 %v1544
        %vm1628 = vweird.f32 %v1621
        %vm1629 = vmor %vm1627, %vm1628
        %v1630 = vsel %vm1629, %v1621, %v1626
        %v1631 = vrsqrt.pop %v1545
        %v1632 = vmul.f32 %v1631, %v1545
        %v1633 = vmul.f32 %v1632, %v1631
        %v1634 = vmul.f32 0.5, %v1633
        %v1635 = vsub.f32 1.5, %v1634
        %v1636 = vmul.f32 %v1631, %v1635
        %vm1637 = vweird.f32 %v1545
        %vm1638 = vweird.f32 %v1631
        %vm1639 = vmor %vm1637, %vm1638
        %v1640 = vsel %vm1639, %v1631, %v1636
        %v1641 = vrsqrt.pop %v1546
        %v1642 = vmul.f32 %v1641, %v1546
        %v1643 = vmul.f32 %v1642, %v1641
        %v1644 = vmul.f32 0.5, %v1643
        %v1645 = vsub.f32 1.5, %v1644
        %v1646 = vmul.f32 %v1641, %v1645
        %vm1647 = vweird.f32 %v1546
        %vm1648 = vweird.f32 %v1641
        %vm1649 = vmor %vm1647, %vm1648
        %v1650 = vsel %vm1649, %v1641, %v1646
        %v1651 = vrsqrt.pop %v1547
        %v1652 = vmul.f32 %v1651, %v1547
        %v1653 = vmul.f32 %v1652, %v1651
        %v1654 = vmul.f32 0.5, %v1653
        %v1655 = vsub.f32 1.5, %v1654
        %v1656 = vmul.f32 %v1651, %v1655
        %vm1657 = vweird.f32 %v1547
        %vm1658 = vweird.f32 %v1651
        %vm1659 = vmor %vm1657, %vm1658
        %v1660 = vsel %vm1659, %v1651, %v1656
        %v1661 = vrsqrt.pop %v1548
        %v1662 = vmul.f32 %v1661, %v1548
        %v1663 = vmul.f32 %v1662, %v1661
        %v1664 = vmul.f32 0.5, %v1663
        %v1665 = vsub.f32 1.5, %v1664
        %v1666 = vmul.f32 %v1661, %v1665
        %vm1667 = vweird.f32 %v1548
        %vm1668 = vweird.f32 %v1661
        %vm1669 = vmor %vm1667, %vm1668
        %v1670 = vsel %vm1669, %v1661, %v1666
        %v1671 = vrsqrt.pop %v1549
        %v1672 = vmul.f32 %v1671, %v1549
        %v1673 = vmul.f32 %v1672, %v1671
        %v1674 = vmul.f32 0.5, %v1673
        %v1675 = vsub.f32 1.5, %v1674
        %v1676 = vmul.f32 %v1671, %v1675
        %vm1677 = vweird.f32 %v1549
        %vm1678 = vweird.f32 %v1671
        %vm1679 = vmor %vm1677, %vm1678
        %v1680 = vsel %vm1679, %v1671, %v1676
        %v1681 = vrsqrt.pop %v1550
        %v1682 = vmul.f32 %v1681, %v1550
        %v1683 = vmul.f32 %v1682, %v1681
        %v1684 = vmul.f32 0.5, %v1683
        %v1685 = vsub.f32 1.5, %v1684
        %v1686 = vmul.f32 %v1681, %v1685
        %vm1687 = vweird.f32 %v1550
        %vm1688 = vweird.f32 %v1681
        %vm1689 = vmor %vm1687, %vm1688
        %v1690 = vsel %vm1689, %v1681, %v1686
        %v1691 = vrsqrt.pop %v1551
        %v1692 = vmul.f32 %v1691, %v1551
        %v1693 = vmul.f32 %v1692, %v1691
        %v1694 = vmul.f32 0.5, %v1693
        %v1695 = vsub.f32 1.5, %v1694
        %v1696 = vmul.f32 %v1691, %v1695
        %vm1697 = vweird.f32 %v1551
        %vm1698 = vweird.f32 %v1691
        %vm1699 = vmor %vm1697, %vm1698
        %v1700 = vsel %vm1699, %v1691, %v1696
        %v1701 = vrsqrt.pop %v1552
        %v1702 = vmul.f32 %v1701, %v1552
        %v1703 = vmul.f32 %v1702, %v1701
        %v1704 = vmul.f32 0.5, %v1703
        %v1705 = vsub.f32 1.5, %v1704
        %v1706 = vmul.f32 %v1701, %v1705
        %vm1707 = vweird.f32 %v1552
        %vm1708 = vweird.f32 %v1701
        %vm1709 = vmor %vm1707, %vm1708
        %v1710 = vsel %vm1709, %v1701, %v1706
        %v1711 = vrsqrt.pop %v1553
        %v1712 = vmul.f32 %v1711, %v1553
        %v1713 = vmul.f32 %v1712, %v1711
        %v1714 = vmul.f32 0.5, %v1713
        %v1715 = vsub.f32 1.5, %v1714
        %v1716 = vmul.f32 %v1711, %v1715
        %vm1717 = vweird.f32 %v1553
        %vm1718 = vweird.f32 %v1711
        %vm1719 = vmor %vm1717, %vm1718
        %v1720 = vsel %vm1719, %v1711, %v1716
        %v1721 = vrsqrt.pop %v1554
        %v1722 = vmul.f32 %v1721, %v1554
        %v1723 = vmul.f32 %v1722, %v1721
        %v1724 = vmul.f32 0.5, %v1723
        %v1725 = vsub.f32 1.5, %v1724
        %v1726 = vmul.f32 %v1721, %v1725
        %vm1727 = vweird.f32 %v1554
        %vm1728 = vweird.f32 %v1721
        %vm1729 = vmor %vm1727, %vm1728
        %v1730 = vsel %vm1729, %v1721, %v1726
        %v1731 = vrsqrt.pop %v1555
        %v1732 = vmul.f32 %v1731, %v1555
        %v1733 = vmul.f32 %v1732, %v1731
        %v1734 = vmul.f32 0.5, %v1733
        %v1735 = vsub.f32 1.5, %v1734
        %v1736 = vmul.f32 %v1731, %v1735
        %vm1737 = vweird.f32 %v1555
        %vm1738 = vweird.f32 %v1731
        %vm1739 = vmor %vm1737, %vm1738
        %v1740 = vsel %vm1739, %v1731, %v1736
        %v1741 = vrsqrt.pop %v1556
        %v1742 = vmul.f32 %v1741, %v1556
        %v1743 = vmul.f32 %v1742, %v1741
        %v1744 = vmul.f32 0.5, %v1743
        %v1745 = vsub.f32 1.5, %v1744
        %v1746 = vmul.f32 %v1741, %v1745
        %vm1747 = vweird.f32 %v1556
        %vm1748 = vweird.f32 %v1741
        %vm1749 = vmor %vm1747, %vm1748
        %v1750 = vsel %vm1749, %v1741, %v1746
        %v1751 = vrsqrt.pop %v1557
        %v1752 = vmul.f32 %v1751, %v1557
        %v1753 = vmul.f32 %v1752, %v1751
        %v1754 = vmul.f32 0.5, %v1753
        %v1755 = vsub.f32 1.5, %v1754
        %v1756 = vmul.f32 %v1751, %v1755
        %vm1757 = vweird.f32 %v1557
        %vm1758 = vweird.f32 %v1751
        %vm1759 = vmor %vm1757, %vm1758
        %v1760 = vsel %vm1759, %v1751, %v1756
        %v1761 = vrsqrt.pop %v1558
        %v1762 = vmul.f32 %v1761, %v1558
        %v1763 = vmul.f32 %v1762, %v1761
        %v1764 = vmul.f32 0.5, %v1763
        %v1765 = vsub.f32 1.5, %v1764
        %v1766 = vmul.f32 %v1761, %v1765
        %vm1767 = vweird.f32 %v1558
        %vm1768 = vweird.f32 %v1761
        %vm1769 = vmor %vm1767, %vm1768
        %v1770 = vsel %vm1769, %v1761, %v1766
        %v1771 = vrsqrt.pop %v1559
        %v1772 = vmul.f32 %v1771, %v1559
        %v1773 = vmul.f32 %v1772, %v1771
        %v1774 = vmul.f32 0.5, %v1773
        %v1775 = vsub.f32 1.5, %v1774
        %v1776 = vmul.f32 %v1771, %v1775
        %vm1777 = vweird.f32 %v1559
        %vm1778 = vweird.f32 %v1771
        %vm1779 = vmor %vm1777, %vm1778
        %v1780 = vsel %vm1779, %v1771, %v1776
        %v1781 = vrsqrt.pop %v1560
        %v1782 = vmul.f32 %v1781, %v1560
        %v1783 = vmul.f32 %v1782, %v1781
        %v1784 = vmul.f32 0.5, %v1783
        %v1785 = vsub.f32 1.5, %v1784
        %v1786 = vmul.f32 %v1781, %v1785
        %vm1787 = vweird.f32 %v1560
        %vm1788 = vweird.f32 %v1781
        %vm1789 = vmor %vm1787, %vm1788
        %v1790 = vsel %vm1789, %v1781, %v1786
        %v1791 = vrsqrt.pop %v1561
        %v1792 = vmul.f32 %v1791, %v1561
        %v1793 = vmul.f32 %v1792, %v1791
        %v1794 = vmul.f32 0.5, %v1793
        %v1795 = vsub.f32 1.5, %v1794
        %v1796 = vmul.f32 %v1791, %v1795
        %vm1797 = vweird.f32 %v1561
        %vm1798 = vweird.f32 %v1791
        %vm1799 = vmor %vm1797, %vm1798
        %v1800 = vsel %vm1799, %v1791, %v1796
        %v1801 = vrsqrt.pop %v1562
        %v1802 = vmul.f32 %v1801, %v1562
        %v1803 = vmul.f32 %v1802, %v1801
        %v1804 = vmul.f32 0.5, %v1803
        %v1805 = vsub.f32 1.5, %v1804
        %v1806 = vmul.f32 %v1801, %v1805
        %vm1807 = vweird.f32 %v1562
        %vm1808 = vweird.f32 %v1801
        %vm1809 = vmor %vm1807, %vm1808
        %v1810 = vsel %vm1809, %v1801, %v1806
        %v1811 = vrsqrt.pop %v1563
        %v1812 = vmul.f32 %v1811, %v1563
        %v1813 = vmul.f32 %v1812, %v1811
        %v1814 = vmul.f32 0.5, %v1813
        %v1815 = vsub.f32 1.5, %v1814
        %v1816 = vmul.f32 %v1811, %v1815
        %vm1817 = vweird.f32 %v1563
        %vm1818 = vweird.f32 %v1811
        %vm1819 = vmor %vm1817, %vm1818
        %v1820 = vsel %vm1819, %v1811, %v1816
        %v1821 = vrsqrt.pop %v1564
        %v1822 = vmul.f32 %v1821, %v1564
        %v1823 = vmul.f32 %v1822, %v1821
        %v1824 = vmul.f32 0.5, %v1823
        %v1825 = vsub.f32 1.5, %v1824
        %v1826 = vmul.f32 %v1821, %v1825
        %vm1827 = vweird.f32 %v1564
        %vm1828 = vweird.f32 %v1821
        %vm1829 = vmor %vm1827, %vm1828
        %v1830 = vsel %vm1829, %v1821, %v1826
        %v1831 = vrsqrt.pop %v1565
        %v1832 = vmul.f32 %v1831, %v1565
        %v1833 = vmul.f32 %v1832, %v1831
        %v1834 = vmul.f32 0.5, %v1833
        %v1835 = vsub.f32 1.5, %v1834
        %v1836 = vmul.f32 %v1831, %v1835
        %vm1837 = vweird.f32 %v1565
        %vm1838 = vweird.f32 %v1831
        %vm1839 = vmor %vm1837, %vm1838
        %v1840 = vsel %vm1839, %v1831, %v1836
        %v1841 = vrsqrt.pop %v1566
        %v1842 = vmul.f32 %v1841, %v1566
        %v1843 = vmul.f32 %v1842, %v1841
        %v1844 = vmul.f32 0.5, %v1843
        %v1845 = vsub.f32 1.5, %v1844
        %v1846 = vmul.f32 %v1841, %v1845
        %vm1847 = vweird.f32 %v1566
        %vm1848 = vweird.f32 %v1841
        %vm1849 = vmor %vm1847, %vm1848
        %v1850 = vsel %vm1849, %v1841, %v1846
        %v1851 = vrsqrt.pop %v1567
        %v1852 = vmul.f32 %v1851, %v1567
        %v1853 = vmul.f32 %v1852, %v1851
        %v1854 = vmul.f32 0.5, %v1853
        %v1855 = vsub.f32 1.5, %v1854
        %v1856 = vmul.f32 %v1851, %v1855
        %vm1857 = vweird.f32 %v1567
        %vm1858 = vweird.f32 %v1851
        %vm1859 = vmor %vm1857, %vm1858
        %v1860 = vsel %vm1859, %v1851, %v1856
        %v1861 = vrsqrt.pop %v1568
        %v1862 = vmul.f32 %v1861, %v1568
        %v1863 = vmul.f32 %v1862, %v1861
        %v1864 = vmul.f32 0.5, %v1863
        %v1865 = vsub.f32 1.5, %v1864
        %v1866 = vmul.f32 %v1861, %v1865
        %vm1867 = vweird.f32 %v1568
        %vm1868 = vweird.f32 %v1861
        %vm1869 = vmor %vm1867, %vm1868
        %v1870 = vsel %vm1869, %v1861, %v1866
        %v1871 = vrsqrt.pop %v1569
        %v1872 = vmul.f32 %v1871, %v1569
        %v1873 = vmul.f32 %v1872, %v1871
        %v1874 = vmul.f32 0.5, %v1873
        %v1875 = vsub.f32 1.5, %v1874
        %v1876 = vmul.f32 %v1871, %v1875
        %vm1877 = vweird.f32 %v1569
        %vm1878 = vweird.f32 %v1871
        %vm1879 = vmor %vm1877, %vm1878
        %v1880 = vsel %vm1879, %v1871, %v1876
        %v1881 = vrsqrt.pop %v1570
        %v1882 = vmul.f32 %v1881, %v1570
        %v1883 = vmul.f32 %v1882, %v1881
        %v1884 = vmul.f32 0.5, %v1883
        %v1885 = vsub.f32 1.5, %v1884
        %v1886 = vmul.f32 %v1881, %v1885
        %vm1887 = vweird.f32 %v1570
        %vm1888 = vweird.f32 %v1881
        %vm1889 = vmor %vm1887, %vm1888
        %v1890 = vsel %vm1889, %v1881, %v1886
        %v1891 = vmul.f32 %v1342, %v1580
        %v1892 = vmul.f32 %v1343, %v1590
        %v1893 = vmul.f32 %v1344, %v1600
        %v1894 = vmul.f32 %v1345, %v1610
        %v1895 = vmul.f32 %v1346, %v1620
        %v1896 = vmul.f32 %v1347, %v1630
        %v1897 = vmul.f32 %v1348, %v1640
        %v1898 = vmul.f32 %v1349, %v1650
        %v1899 = vmul.f32 %v1350, %v1660
        %v1900 = vmul.f32 %v1351, %v1670
        %v1901 = vmul.f32 %v1352, %v1680
        %v1902 = vmul.f32 %v1353, %v1690
        %v1903 = vmul.f32 %v1354, %v1700
        %v1904 = vmul.f32 %v1355, %v1710
        %v1905 = vmul.f32 %v1356, %v1720
        %v1906 = vmul.f32 %v1357, %v1730
        %v1907 = vmul.f32 %v1358, %v1740
        %v1908 = vmul.f32 %v1359, %v1750
        %v1909 = vmul.f32 %v1360, %v1760
        %v1910 = vmul.f32 %v1361, %v1770
        %v1911 = vmul.f32 %v1362, %v1780
        %v1912 = vmul.f32 %v1363, %v1790
        %v1913 = vmul.f32 %v1364, %v1800
        %v1914 = vmul.f32 %v1365, %v1810
        %v1915 = vmul.f32 %v1366, %v1820
        %v1916 = vmul.f32 %v1367, %v1830
        %v1917 = vmul.f32 %v1368, %v1840
        %v1918 = vmul.f32 %v1369, %v1850
        %v1919 = vmul.f32 %v1370, %v1860
        %v1920 = vmul.f32 %v1371, %v1870
        %v1921 = vmul.f32 %v1372, %v1880
        %v1922 = vmul.f32 %v1373, %v1890
        %v1923 = vld [vmem:[%s7] sm:$0x1]
        %v1925 = vperm.slane %v1923, 0
        %v1927 = vmul.f32 %v1891, %v1925
        %v1928 = vmul.f32 %v1892, %v1925
        %v1929 = vmul.f32 %v1893, %v1925
        %v1930 = vmul.f32 %v1894, %v1925
        %v1931 = vmul.f32 %v1895, %v1925
        %v1932 = vmul.f32 %v1896, %v1925
        %v1933 = vmul.f32 %v1897, %v1925
        %v1934 = vmul.f32 %v1898, %v1925
        %v1935 = vmul.f32 %v1899, %v1925
        %v1936 = vmul.f32 %v1900, %v1925
        %v1937 = vmul.f32 %v1901, %v1925
        %v1938 = vmul.f32 %v1902, %v1925
        %v1939 = vmul.f32 %v1903, %v1925
        %v1940 = vmul.f32 %v1904, %v1925
        %v1941 = vmul.f32 %v1905, %v1925
        %v1942 = vmul.f32 %v1906, %v1925
        %v1943 = vmul.f32 %v1907, %v1925
        %v1944 = vmul.f32 %v1908, %v1925
        %v1945 = vmul.f32 %v1909, %v1925
        %v1946 = vmul.f32 %v1910, %v1925
        %v1947 = vmul.f32 %v1911, %v1925
        %v1948 = vmul.f32 %v1912, %v1925
        %v1949 = vmul.f32 %v1913, %v1925
        %v1950 = vmul.f32 %v1914, %v1925
        %v1951 = vmul.f32 %v1915, %v1925
        %v1952 = vmul.f32 %v1916, %v1925
        %v1953 = vmul.f32 %v1917, %v1925
        %v1954 = vmul.f32 %v1918, %v1925
        %v1955 = vmul.f32 %v1919, %v1925
        %v1956 = vmul.f32 %v1920, %v1925
        %v1957 = vmul.f32 %v1921, %v1925
        %v1958 = vmul.f32 %v1922, %v1925
        %v1959 = vld [vmem:[%s8] sm:$0x1]
        %v1961 = vperm.slane %v1959, 0
        %v1963 = vadd.f32 %v1927, %v1961
        %v1964 = vadd.f32 %v1928, %v1961
        %v1965 = vadd.f32 %v1929, %v1961
        %v1966 = vadd.f32 %v1930, %v1961
        %v1967 = vadd.f32 %v1931, %v1961
        %v1968 = vadd.f32 %v1932, %v1961
        %v1969 = vadd.f32 %v1933, %v1961
        %v1970 = vadd.f32 %v1934, %v1961
        %v1971 = vadd.f32 %v1935, %v1961
        %v1972 = vadd.f32 %v1936, %v1961
        %v1973 = vadd.f32 %v1937, %v1961
        %v1974 = vadd.f32 %v1938, %v1961
        %v1975 = vadd.f32 %v1939, %v1961
        %v1976 = vadd.f32 %v1940, %v1961
        %v1977 = vadd.f32 %v1941, %v1961
        %v1978 = vadd.f32 %v1942, %v1961
        %v1979 = vadd.f32 %v1943, %v1961
        %v1980 = vadd.f32 %v1944, %v1961
        %v1981 = vadd.f32 %v1945, %v1961
        %v1982 = vadd.f32 %v1946, %v1961
        %v1983 = vadd.f32 %v1947, %v1961
        %v1984 = vadd.f32 %v1948, %v1961
        %v1985 = vadd.f32 %v1949, %v1961
        %v1986 = vadd.f32 %v1950, %v1961
        %v1987 = vadd.f32 %v1951, %v1961
        %v1988 = vadd.f32 %v1952, %v1961
        %v1989 = vadd.f32 %v1953, %v1961
        %v1990 = vadd.f32 %v1954, %v1961
        %v1991 = vadd.f32 %v1955, %v1961
        %v1992 = vadd.f32 %v1956, %v1961
        %v1993 = vadd.f32 %v1957, %v1961
        %v1994 = vadd.f32 %v1958, %v1961
        %v1995 = vpack.c.bf16 %v1963, %v1963
        %v1996 = vpack.c.bf16 %v1964, %v1964
        %v1997 = vpack.c.bf16 %v1965, %v1965
        %v1998 = vpack.c.bf16 %v1966, %v1966
        %v1999 = vpack.c.bf16 %v1967, %v1967
        %v2000 = vpack.c.bf16 %v1968, %v1968
        %v2001 = vpack.c.bf16 %v1969, %v1969
        %v2002 = vpack.c.bf16 %v1970, %v1970
        %v2003 = vpack.c.bf16 %v1971, %v1971
        %v2004 = vpack.c.bf16 %v1972, %v1972
        %v2005 = vpack.c.bf16 %v1973, %v1973
        %v2006 = vpack.c.bf16 %v1974, %v1974
        %v2007 = vpack.c.bf16 %v1975, %v1975
        %v2008 = vpack.c.bf16 %v1976, %v1976
        %v2009 = vpack.c.bf16 %v1977, %v1977
        %v2010 = vpack.c.bf16 %v1978, %v1978
        %v2011 = vpack.c.bf16 %v1979, %v1979
        %v2012 = vpack.c.bf16 %v1980, %v1980
        %v2013 = vpack.c.bf16 %v1981, %v1981
        %v2014 = vpack.c.bf16 %v1982, %v1982
        %v2015 = vpack.c.bf16 %v1983, %v1983
        %v2016 = vpack.c.bf16 %v1984, %v1984
        %v2017 = vpack.c.bf16 %v1985, %v1985
        %v2018 = vpack.c.bf16 %v1986, %v1986
        %v2019 = vpack.c.bf16 %v1987, %v1987
        %v2020 = vpack.c.bf16 %v1988, %v1988
        %v2021 = vpack.c.bf16 %v1989, %v1989
        %v2022 = vpack.c.bf16 %v1990, %v1990
        %v2023 = vpack.c.bf16 %v1991, %v1991
        %v2024 = vpack.c.bf16 %v1992, %v1992
        %v2025 = vpack.c.bf16 %v1993, %v1993
        %v2026 = vpack.c.bf16 %v1994, %v1994
        %2027 = vst [vmem:[%s326] sm:$0xf] %v1995
        %2028 = vst [vmem:[%s326 + $0x4] sm:$0xf] %v1996
        %2029 = vst [vmem:[%s326 + $0x8] sm:$0xf] %v1997
        %2030 = vst [vmem:[%s326 + $0xc] sm:$0xf] %v1998
        %2031 = vst [vmem:[%s326 + $0x10] sm:$0xf] %v1999
        %2032 = vst [vmem:[%s326 + $0x14] sm:$0xf] %v2000
        %2033 = vst [vmem:[%s326 + $0x18] sm:$0xf] %v2001
        %2034 = vst [vmem:[%s326 + $0x1c] sm:$0xf] %v2002
        %2035 = vst [vmem:[%s326 + $0x20] sm:$0xf] %v2003
        %2036 = vst [vmem:[%s326 + $0x24] sm:$0xf] %v2004
        %2037 = vst [vmem:[%s326 + $0x28] sm:$0xf] %v2005
        %2038 = vst [vmem:[%s326 + $0x2c] sm:$0xf] %v2006
        %2039 = vst [vmem:[%s326 + $0x30] sm:$0xf] %v2007
        %2040 = vst [vmem:[%s326 + $0x34] sm:$0xf] %v2008
        %2041 = vst [vmem:[%s326 + $0x38] sm:$0xf] %v2009
        %2042 = vst [vmem:[%s326 + $0x3c] sm:$0xf] %v2010
        %2043 = vst [vmem:[%s326 + $0x40] sm:$0xf] %v2011
        %2044 = vst [vmem:[%s326 + $0x44] sm:$0xf] %v2012
        %2045 = vst [vmem:[%s326 + $0x48] sm:$0xf] %v2013
        %2046 = vst [vmem:[%s326 + $0x4c] sm:$0xf] %v2014
        %2047 = vst [vmem:[%s326 + $0x50] sm:$0xf] %v2015
        %2048 = vst [vmem:[%s326 + $0x54] sm:$0xf] %v2016
        %2049 = vst [vmem:[%s326 + $0x58] sm:$0xf] %v2017
        %2050 = vst [vmem:[%s326 + $0x5c] sm:$0xf] %v2018
        %2051 = vst [vmem:[%s326 + $0x60] sm:$0xf] %v2019
        %2052 = vst [vmem:[%s326 + $0x64] sm:$0xf] %v2020
        %2053 = vst [vmem:[%s326 + $0x68] sm:$0xf] %v2021
        %2054 = vst [vmem:[%s326 + $0x6c] sm:$0xf] %v2022
        %2055 = vst [vmem:[%s326 + $0x70] sm:$0xf] %v2023
        %2056 = vst [vmem:[%s326 + $0x74] sm:$0xf] %v2024
        %2057 = vst [vmem:[%s326 + $0x78] sm:$0xf] %v2025
        %2058 = vst [vmem:[%s326 + $0x7c] sm:$0xf] %v2026
        %s2059 = sand.u32 %s225, 1
        %s2060 = scalar_lea.sflag [#allocation3], %s2059
        %s2061 = sand.u32 %s225, 1
        %s2062 = smul.addr %s2061, 128
        %s2063 = scalar_lea.vmem [#allocation2], %s2062
        // Predicated region
        $region57: #{tpu_custom_call.1} parent=55 // pred_check
          %p2064 = pneg %p235
        $region58: #{tpu_custom_call.1} parent=55 // pred_check_branch
          %2066 = sbr.rel (%p2064) target = $region60
        $region59: #{tpu_custom_call.1} parent=55 // pred_region
          %s2067 = smul.u32 32, %s23
          %2069 = vsyncadd %s2060, 0
          %s2070 = smul.addr %s2067, 4
          %s2071 = scalar_lea.hbm %s9, %s2070
          %s2072 = sshll.u32 %s2063, 4
          %s2073 = int_to_ptr.vmem [resolvable:$true] %s2072
          %s2074 = sshll.u32 %s2071, 4
          %s2075 = int_to_ptr.hbm [resolvable:$true] %s2074
          %2080 = dma.vmem_to_hbm [thread:$0]  %s2073, 2048, %s2075, %s2060, 64, 64, 4
        $region60: #{tpu_custom_call.1} parent=55 // pred_fallthru
          _
      $region56: #{tpu_custom_call.1} parent=5 // pred_fallthru
        _
      %p2081 = scmp.le.s32.totalorder 2, %s18
      // Predicated region
      $region61: #{tpu_custom_call.1} parent=5 // pred_check
        %p2082 = pneg %p2081
      $region62: #{tpu_custom_call.1} parent=5 // pred_check_branch
        %2084 = sbr.rel (%p2082) target = $region64
      $region63: #{tpu_custom_call.1} parent=5 // pred_region
        %s2085 = ssub.s32 %s18, 2
        // Predicated region
        $region65: #{tpu_custom_call.1} parent=63 // pred_check
          %p2086 = pneg %p241
        $region66: #{tpu_custom_call.1} parent=63 // pred_check_branch
          %2088 = sbr.rel (%p2086) target = $region68
        $region67: #{tpu_custom_call.1} parent=63 // pred_region
          %s2089 = sand.u32 %s226, 1
          %s2090 = scalar_lea.sflag [#allocation3], %s2089
          %s2091 = sand.u32 %s226, 1
          %s2092 = smul.addr %s2091, 128
          %s2093 = scalar_lea.vmem [#allocation2], %s2092
          %2095 = dma.done %s2090, 2048
        $region68: #{tpu_custom_call.1} parent=63 // pred_fallthru
          _
      $region64: #{tpu_custom_call.1} parent=5 // pred_fallthru
        _
    $region6: #{tpu_custom_call.1} parent=1 // loop_footer
      %s22 = sadd.s32 1, %s18
    $region7: #{tpu_custom_call.1} parent=1 // loop_footer_branch
      %17 = sbr.rel target = $region3
    $region8: #{tpu_custom_call.1} parent=1 // loop_exit
      _
    %2096 = vsyncpa [#allocation3], 1
    %s2097 = scalar_lea.sflag [#allocation3], 1
    %2098 = vsyncpa %s2097, 1

</llo_original>
